<compile_context>
chip_gen: v7x
topology: tpu7x:2x2x1
jax: 0.10.0
libtpu: 0.0.40
codegen_flags: <defaults>
</compile_context>

<pallas_src>
import jax
import jax.numpy as jnp
from jax.experimental import pallas as pl
from jax.experimental.pallas import tpu as pltpu

LN_EPS = 1e-5                 # PyTorch nn.LayerNorm default
MM_DTYPE = jnp.bfloat16       # MXU input dtype (accumulation stays f32)


def _layernorm_lastdim(x):
    # LayerNorm over last dim, no affine (elementwise_affine=False), biased variance.
    x = x.astype(jnp.float32)
    mean = jnp.mean(x, axis=-1, keepdims=True)
    var = jnp.mean((x - mean) ** 2, axis=-1, keepdims=True)
    return (x - mean) * jax.lax.rsqrt(var + LN_EPS)


# ---------------------------------------------------------------------------
# Fused kernel: for a block of `block_b` batch elements, run every
# GraphConvolution layer (Linear -> bmm(adj, .) -> LayerNorm -> ReLU), then the
# residual add + final LayerNorm, entirely in VMEM.
# x_ref is f32; adj_ref / w_ref arrive already in bf16 (no in-kernel casts).
# ---------------------------------------------------------------------------
def gcn_fused_kernel(x_ref, adj_ref, w_ref, out_ref):
    bb, n, f = x_ref.shape          # (block_b, N, F)
    num_layers = w_ref.shape[0]

    x = x_ref[...].astype(jnp.float32)   # residual input, kept in f32
    adj = adj_ref[...]                   # (bb, N, N) bf16, read once, reused per layer

    h = x
    for l in range(num_layers):          # static unroll over layers
        # Linear: fold batch into M so the MXU sees one (bb*N, F) @ (F, F) matmul.
        support = jnp.dot(
            h.astype(MM_DTYPE).reshape(bb * n, f), w_ref[l],
            preferred_element_type=jnp.float32,
        ).reshape(bb, n, f).astype(MM_DTYPE)   # only the bf16 copy stays live

        # Neighborhood aggregation: out[b] = adj[b] @ support[b] (batched MXU).
        out = jnp.einsum("bij,bjf->bif", adj, support,
                         preferred_element_type=jnp.float32)

        h = jnp.maximum(_layernorm_lastdim(out), 0.0)   # LN then ReLU, f32 VPU math
        # TODO(synk): dropout omitted (inference / eval-mode semantics -> identity)

    # Residual + final LayerNorm fused into the same kernel (no extra HBM trip).
    out_ref[...] = _layernorm_lastdim(x + h).astype(out_ref.dtype)


# ---------------------------------------------------------------------------
# Generation-aware sizing helpers
# ---------------------------------------------------------------------------
def _vmem_capacity_bytes():
    try:
        return int(pltpu.get_tpu_info().vmem_capacity_bytes)
    except Exception:
        return 128 << 20     # conservative v5e/v6e default


def _is_v5e():
    try:
        kind = jax.devices()[0].device_kind.lower()
        return ("v5e" in kind) or ("v5 lite" in kind) or ("v5litepod" in kind)
    except Exception:
        return False


def _working_set_bytes(bb, N, F, L, adj_bufs):
    adj_b = adj_bufs * bb * N * N * 2        # bf16 adj, multi-buffered
    x_b = 2 * bb * N * F * 4                 # f32 x, double-buffered
    out_b = 2 * bb * N * F * 4               # f32 out, double-buffered
    w_b = 2 * L * F * F * 2                  # bf16 weight stack, double-buffered
    tmp_b = 3 * bb * N * F * 4               # in-kernel f32 live intermediates
    return adj_b + x_b + out_b + w_b + tmp_b


def _pick_block_b(B, N, F, L, budget_bytes, adj_bufs=2, target_m=512):
    """Pick block_b so the working set fits, the grid keeps >=2 steps (megacore),
    and the folded matmul M = block_b*N is as large as reasonably possible."""
    divisors = [bb for bb in range(1, B + 1) if B % bb == 0]
    fitting = [bb for bb in divisors
               if _working_set_bytes(bb, N, F, L, adj_bufs) <= budget_bytes]
    if not fitting:
        # TODO(synk): for very large N (multi-thousand-node graphs) even bb=1 may not
        # fit v7x's 64 MiB VMEM; the adjacency should then be K-tiled over its
        # contraction dim with an f32 accumulator (P3) instead of held whole.
        return 1
    min_grid = 2 if B >= 2 else 1
    pref = [bb for bb in fitting if B // bb >= min_grid] or fitting
    for bb in pref:                          # smallest bb already reaching target M
        if bb * N >= target_m:
            return bb
    return max(pref)                          # else the largest that keeps grid >= 2


# ---------------------------------------------------------------------------
# Wrapper
# ---------------------------------------------------------------------------
def gcn_forward(x, adj, weights, *, block_b=None):
    """Forward pass matching the PyTorch GCN module (dropout in eval mode)."""
    B, N, F = x.shape
    L = len(weights)
    for w in weights:
        if w.shape != (F, F):
            raise ValueError(
                "GCN residual + final LayerNorm require "
                "input_size == hidden_size == num_classes"
            )

    # Ship the heavy tensors to the kernel already in bf16 (halves adj HBM bytes
    # and its resident VMEM); x stays f32 for the residual / LN path.
    wt_stack = jnp.stack([w.T for w in weights], axis=0).astype(MM_DTYPE)  # (L, F, F)
    adj_mm = adj.astype(MM_DTYPE)

    vmem_cap = _vmem_capacity_bytes()
    budget = vmem_cap // 3                   # ~42 MiB on v5e/v6e, ~21 MiB on v7x
    adj_bufs = 3 if _is_v5e() else 2         # deeper adj pipelining on low-BW v5e

    if block_b is None:
        block_b = _pick_block_b(B, N, F, L, budget_bytes=budget, adj_bufs=adj_bufs)
    assert B % block_b == 0
    grid = (B // block_b,)

    # vmem limit: working set with headroom, never more than 75% of physical
    # (on v7x that caps at ~48 MiB of its 64 MiB/TC).
    ws = _working_set_bytes(block_b, N, F, L, adj_bufs)
    vmem_limit = int(min(max(int(1.5 * ws), 32 << 20), int(0.75 * vmem_cap)))

    adj_spec_kwargs = {}
    if adj_bufs > 2 and hasattr(pl, "Buffered"):
        adj_spec_kwargs["pipeline_mode"] = pl.Buffered(adj_bufs)

    # Advisory cost estimate so XLA schedules surrounding ops sensibly.
    flops = L * (2 * B * N * F * F + 2 * B * N * N * F)
    bytes_accessed = (2 * B * N * F * 4      # x in + out, f32
                      + B * N * N * 2        # adj, bf16
                      + L * F * F * 2)       # weights, bf16 (constant index map)
    transcendentals = (L + 1) * B * N        # one rsqrt per LayerNorm row
    cost = pl.CostEstimate(flops=flops, transcendentals=transcendentals,
                           bytes_accessed=bytes_accessed)

    # TODO(synk): for L*F*F large, move the (constant-index) weight stack into a
    # persistent VMEM scratch filled once via make_async_copy under
    # pl.when(program_id == 0) to drop its double-buffered residency.
    return pl.pallas_call(
        gcn_fused_kernel,
        out_shape=jax.ShapeDtypeStruct((B, N, F), x.dtype),
        grid_spec=pltpu.PrefetchScalarGridSpec(
            num_scalar_prefetch=0,
            grid=grid,
            in_specs=[
                pl.BlockSpec((block_b, N, F), lambda b: (b, 0, 0)),
                pl.BlockSpec((block_b, N, N), lambda b: (b, 0, 0),
                             **adj_spec_kwargs),
                pl.BlockSpec((L, F, F), lambda b: (0, 0, 0)),
            ],
            out_specs=pl.BlockSpec((block_b, N, F), lambda b: (b, 0, 0)),
        ),
        compiler_params=pltpu.CompilerParams(
            dimension_semantics=("parallel",),
            vmem_limit_bytes=vmem_limit,
        ),
        cost_estimate=cost,
    )(x, adj_mm, wt_stack)


# ---------------------------------------------------------------------------
# Pure-JAX reference mirroring the kernel's bf16-MXU / f32-accumulate numerics.
# ---------------------------------------------------------------------------
def gcn_forward_ref(x, adj, weights):
    x = x.astype(jnp.float32)
    adj_mm = adj.astype(MM_DTYPE)
    h = x
    for w in weights:
        support = jnp.einsum(
            "bnf,fg->bng", h.astype(MM_DTYPE), w.T.astype(MM_DTYPE),
            preferred_element_type=jnp.float32,
        )
        out = jnp.einsum(
            "bij,bjf->bif", adj_mm, support.astype(MM_DTYPE),
            preferred_element_type=jnp.float32,
        )
        h = jnp.maximum(_layernorm_lastdim(out), 0.0)
    return _layernorm_lastdim(x + h)


if __name__ == "__main__":
    # Small shapes.  The residual (x + x_gcn[-1]) and the final LayerNorm require
    # input_size == hidden_size == num_classes.  N = F = 128 keeps the adj and
    # output blocks lane-dense and the MXU tiles full; B = 4 gives the block
    # picker room to keep >=2 grid steps (megacore) while folding M = block_b*N.
    B, N = 4, 128
    input_size = hidden_size = num_classes = 128
    num_layers = 1  # -> two GraphConvolution layers: (in->hidden), (hidden->classes)

    key = jax.random.PRNGKey(0)
    kx, kadj, kw0, kw1 = jax.random.split(key, 4)

    x = jax.random.normal(kx, (B, N, input_size), dtype=jnp.float32)
    # Row-normalized random dense adjacency, deterministic.
    adj_raw = jax.random.uniform(kadj, (B, N, N), dtype=jnp.float32)
    adj = adj_raw / jnp.sum(adj_raw, axis=-1, keepdims=True)

    # Deterministic nn.Linear-style uniform fan-in init, PyTorch (F_out, F_in) layout.
    def linear_weight(k, fan_out, fan_in):
        bound = 1.0 / jnp.sqrt(fan_in)
        return jax.random.uniform(k, (fan_out, fan_in), jnp.float32, -bound, bound)

    weights = [
        linear_weight(kw0, hidden_size, input_size),
        linear_weight(kw1, num_classes, hidden_size),
    ]

    out = gcn_forward(x, adj, weights)
    out = jax.block_until_ready(out)

    ref = gcn_forward_ref(x, adj, weights)
    if not jnp.allclose(out, ref, atol=2e-3, rtol=2e-3):
        max_err = jnp.max(jnp.abs(out - ref))
        raise AssertionError(f"Pallas GCN mismatches JAX reference (max err {max_err})")

    print("KERNEL_OK")
</pallas_src>

<mosaic_0001>
module attributes {stable_mosaic.version = 11 : i64} {
  func.func @gcn_fused_kernel(%arg0: i32, %arg1: memref<2x128x128xf32, #tpu.memory_space<vmem>>, %arg2: memref<2x128x128xbf16, #tpu.memory_space<vmem>>, %arg3: memref<2x128x128xbf16, #tpu.memory_space<vmem>>, %arg4: memref<2x128x128xf32, #tpu.memory_space<vmem>>) attributes {dimension_semantics = [#tpu.dimension_semantics<parallel>], iteration_bounds = array<i64: 2>, scalar_prefetch = 0 : i64, scratch_operands = 0 : i64, tpu.core_type = #tpu.core_type<tc>, window_params = [{transform_indices = @transform_0, window_bounds = array<i64: 2, 128, 128>}, {transform_indices = @transform_1, window_bounds = array<i64: 2, 128, 128>}, {pipeline_mode = #tpu.pipeline_mode<synchronous>, transform_indices = @transform_2, window_bounds = array<i64: 2, 128, 128>}, {transform_indices = @transform_3, window_bounds = array<i64: 2, 128, 128>}]} {
    %c0 = arith.constant 0 : index
    %c0_0 = arith.constant 0 : index
    %c0_1 = arith.constant 0 : index
    %0 = vector.load %arg1[%c0, %c0_0, %c0_1] : memref<2x128x128xf32, #tpu.memory_space<vmem>>, vector<2x128x128xf32>
    %c0_2 = arith.constant 0 : index
    %c0_3 = arith.constant 0 : index
    %c0_4 = arith.constant 0 : index
    %1 = vector.load %arg2[%c0_2, %c0_3, %c0_4] : memref<2x128x128xbf16, #tpu.memory_space<vmem>>, vector<2x128x128xbf16>
    %2 = arith.truncf %0 : vector<2x128x128xf32> to vector<2x128x128xbf16>
    %3 = vector.shape_cast %2 : vector<2x128x128xbf16> to vector<256x128xbf16>
    %c0_5 = arith.constant 0 : index
    %c0_6 = arith.constant 0 : index
    %c0_7 = arith.constant 0 : index
    %4 = vector.load %arg3[%c0_5, %c0_6, %c0_7] : memref<2x128x128xbf16, #tpu.memory_space<vmem>>, vector<1x128x128xbf16>
    %5 = vector.shape_cast %4 : vector<1x128x128xbf16> to vector<128x128xbf16>
    %cst = arith.constant dense<0.000000e+00> : vector<256x128xf32>
    %6 = tpu.matmul %3, %5, %cst {dimension_numbers = #tpu.dot_dimension_numbers<[1], [0], [0], [1], [0, 0, 1, 1], [], []>} : vector<256x128xbf16>, vector<128x128xbf16>, vector<256x128xf32> -> vector<256x128xf32>
    %7 = vector.shape_cast %6 : vector<256x128xf32> to vector<2x128x128xf32>
    %8 = arith.truncf %7 : vector<2x128x128xf32> to vector<2x128x128xbf16>
    "tpu.trace_start"() <{level = 10 : i32, message = "bij,bjf->bif"}> : () -> ()
    %cst_8 = arith.constant dense<0.000000e+00> : vector<2x128x128xf32>
    %9 = tpu.matmul %1, %8, %cst_8 {dimension_numbers = #tpu.dot_dimension_numbers<[2], [1], [1], [2], [0, 0, 0, 1, 1, 2], [0], [0]>} : vector<2x128x128xbf16>, vector<2x128x128xbf16>, vector<2x128x128xf32> -> vector<2x128x128xf32>
    "tpu.trace_stop"() : () -> ()
    %cst_9 = arith.constant dense<0.000000e+00> : vector<2x128xf32>
    %10 = vector.multi_reduction <add>, %9, %cst_9 [2] : vector<2x128x128xf32> to vector<2x128xf32>
    %11 = vector.shape_cast %10 : vector<2x128xf32> to vector<2x128x1xf32>
    %cst_10 = arith.constant 1.280000e+02 : f32
    %12 = vector.broadcast %cst_10 : f32 to vector<2x128x1xf32>
    %13 = arith.divf %11, %12 : vector<2x128x1xf32>
    %14 = vector.broadcast %13 : vector<2x128x1xf32> to vector<2x128x128xf32>
    %15 = arith.subf %9, %14 : vector<2x128x128xf32>
    %16 = arith.mulf %15, %15 : vector<2x128x128xf32>
    %cst_11 = arith.constant dense<0.000000e+00> : vector<2x128xf32>
    %17 = vector.multi_reduction <add>, %16, %cst_11 [2] : vector<2x128x128xf32> to vector<2x128xf32>
    %18 = vector.shape_cast %17 : vector<2x128xf32> to vector<2x128x1xf32>
    %cst_12 = arith.constant 1.280000e+02 : f32
    %19 = vector.broadcast %cst_12 : f32 to vector<2x128x1xf32>
    %20 = arith.divf %18, %19 : vector<2x128x1xf32>
    %21 = vector.broadcast %13 : vector<2x128x1xf32> to vector<2x128x128xf32>
    %22 = arith.subf %9, %21 : vector<2x128x128xf32>
    %cst_13 = arith.constant 9.99999974E-6 : f32
    %23 = vector.broadcast %cst_13 : f32 to vector<2x128x1xf32>
    %24 = arith.addf %20, %23 : vector<2x128x1xf32>
    %25 = math.rsqrt %24 : vector<2x128x1xf32>
    %26 = vector.broadcast %25 : vector<2x128x1xf32> to vector<2x128x128xf32>
    %27 = arith.mulf %22, %26 : vector<2x128x128xf32>
    %cst_14 = arith.constant 0.000000e+00 : f32
    %28 = vector.broadcast %cst_14 : f32 to vector<2x128x128xf32>
    %29 = arith.maximumf %27, %28 : vector<2x128x128xf32>
    %30 = arith.truncf %29 : vector<2x128x128xf32> to vector<2x128x128xbf16>
    %31 = vector.shape_cast %30 : vector<2x128x128xbf16> to vector<256x128xbf16>
    %c1 = arith.constant 1 : index
    %c0_15 = arith.constant 0 : index
    %c0_16 = arith.constant 0 : index
    %32 = vector.load %arg3[%c1, %c0_15, %c0_16] : memref<2x128x128xbf16, #tpu.memory_space<vmem>>, vector<1x128x128xbf16>
    %33 = vector.shape_cast %32 : vector<1x128x128xbf16> to vector<128x128xbf16>
    %cst_17 = arith.constant dense<0.000000e+00> : vector<256x128xf32>
    %34 = tpu.matmul %31, %33, %cst_17 {dimension_numbers = #tpu.dot_dimension_numbers<[1], [0], [0], [1], [0, 0, 1, 1], [], []>} : vector<256x128xbf16>, vector<128x128xbf16>, vector<256x128xf32> -> vector<256x128xf32>
    %35 = vector.shape_cast %34 : vector<256x128xf32> to vector<2x128x128xf32>
    %36 = arith.truncf %35 : vector<2x128x128xf32> to vector<2x128x128xbf16>
    "tpu.trace_start"() <{level = 10 : i32, message = "bij,bjf->bif"}> : () -> ()
    %cst_18 = arith.constant dense<0.000000e+00> : vector<2x128x128xf32>
    %37 = tpu.matmul %1, %36, %cst_18 {dimension_numbers = #tpu.dot_dimension_numbers<[2], [1], [1], [2], [0, 0, 0, 1, 1, 2], [0], [0]>} : vector<2x128x128xbf16>, vector<2x128x128xbf16>, vector<2x128x128xf32> -> vector<2x128x128xf32>
    "tpu.trace_stop"() : () -> ()
    %cst_19 = arith.constant dense<0.000000e+00> : vector<2x128xf32>
    %38 = vector.multi_reduction <add>, %37, %cst_19 [2] : vector<2x128x128xf32> to vector<2x128xf32>
    %39 = vector.shape_cast %38 : vector<2x128xf32> to vector<2x128x1xf32>
    %cst_20 = arith.constant 1.280000e+02 : f32
    %40 = vector.broadcast %cst_20 : f32 to vector<2x128x1xf32>
    %41 = arith.divf %39, %40 : vector<2x128x1xf32>
    %42 = vector.broadcast %41 : vector<2x128x1xf32> to vector<2x128x128xf32>
    %43 = arith.subf %37, %42 : vector<2x128x128xf32>
    %44 = arith.mulf %43, %43 : vector<2x128x128xf32>
    %cst_21 = arith.constant dense<0.000000e+00> : vector<2x128xf32>
    %45 = vector.multi_reduction <add>, %44, %cst_21 [2] : vector<2x128x128xf32> to vector<2x128xf32>
    %46 = vector.shape_cast %45 : vector<2x128xf32> to vector<2x128x1xf32>
    %cst_22 = arith.constant 1.280000e+02 : f32
    %47 = vector.broadcast %cst_22 : f32 to vector<2x128x1xf32>
    %48 = arith.divf %46, %47 : vector<2x128x1xf32>
    %49 = vector.broadcast %41 : vector<2x128x1xf32> to vector<2x128x128xf32>
    %50 = arith.subf %37, %49 : vector<2x128x128xf32>
    %cst_23 = arith.constant 9.99999974E-6 : f32
    %51 = vector.broadcast %cst_23 : f32 to vector<2x128x1xf32>
    %52 = arith.addf %48, %51 : vector<2x128x1xf32>
    %53 = math.rsqrt %52 : vector<2x128x1xf32>
    %54 = vector.broadcast %53 : vector<2x128x1xf32> to vector<2x128x128xf32>
    %55 = arith.mulf %50, %54 : vector<2x128x128xf32>
    %cst_24 = arith.constant 0.000000e+00 : f32
    %56 = vector.broadcast %cst_24 : f32 to vector<2x128x128xf32>
    %57 = arith.maximumf %55, %56 : vector<2x128x128xf32>
    %58 = arith.addf %0, %57 : vector<2x128x128xf32>
    %cst_25 = arith.constant dense<0.000000e+00> : vector<2x128xf32>
    %59 = vector.multi_reduction <add>, %58, %cst_25 [2] : vector<2x128x128xf32> to vector<2x128xf32>
    %60 = vector.shape_cast %59 : vector<2x128xf32> to vector<2x128x1xf32>
    %cst_26 = arith.constant 1.280000e+02 : f32
    %61 = vector.broadcast %cst_26 : f32 to vector<2x128x1xf32>
    %62 = arith.divf %60, %61 : vector<2x128x1xf32>
    %63 = vector.broadcast %62 : vector<2x128x1xf32> to vector<2x128x128xf32>
    %64 = arith.subf %58, %63 : vector<2x128x128xf32>
    %65 = arith.mulf %64, %64 : vector<2x128x128xf32>
    %cst_27 = arith.constant dense<0.000000e+00> : vector<2x128xf32>
    %66 = vector.multi_reduction <add>, %65, %cst_27 [2] : vector<2x128x128xf32> to vector<2x128xf32>
    %67 = vector.shape_cast %66 : vector<2x128xf32> to vector<2x128x1xf32>
    %cst_28 = arith.constant 1.280000e+02 : f32
    %68 = vector.broadcast %cst_28 : f32 to vector<2x128x1xf32>
    %69 = arith.divf %67, %68 : vector<2x128x1xf32>
    %70 = vector.broadcast %62 : vector<2x128x1xf32> to vector<2x128x128xf32>
    %71 = arith.subf %58, %70 : vector<2x128x128xf32>
    %cst_29 = arith.constant 9.99999974E-6 : f32
    %72 = vector.broadcast %cst_29 : f32 to vector<2x128x1xf32>
    %73 = arith.addf %69, %72 : vector<2x128x1xf32>
    %74 = math.rsqrt %73 : vector<2x128x1xf32>
    %75 = vector.broadcast %74 : vector<2x128x1xf32> to vector<2x128x128xf32>
    %76 = arith.mulf %71, %75 : vector<2x128x128xf32>
    %c0_30 = arith.constant 0 : index
    %c0_31 = arith.constant 0 : index
    %c0_32 = arith.constant 0 : index
    %77 = vector.load %arg4[%c0_30, %c0_31, %c0_32] : memref<2x128x128xf32, #tpu.memory_space<vmem>>, vector<2x128x128xf32>
    tpu.vector_store %arg4[%c0_30, %c0_31, %c0_32], %76 {strides = array<i32>} : memref<2x128x128xf32, #tpu.memory_space<vmem>>, vector<2x128x128xf32>,
    return
  }
  func.func @transform_0(%arg0: i32) -> (i32, i32, i32) {
    %c0_i32 = arith.constant 0 : i32
    %c0_i32_0 = arith.constant 0 : i32
    %c0_i32_1 = arith.constant 0 : i32
    return %arg0, %c0_i32, %c0_i32_0 : i32, i32, i32
  }
  func.func @transform_1(%arg0: i32) -> (i32, i32, i32) {
    %c0_i32 = arith.constant 0 : i32
    %c0_i32_0 = arith.constant 0 : i32
    %c0_i32_1 = arith.constant 0 : i32
    return %arg0, %c0_i32, %c0_i32_0 : i32, i32, i32
  }
  func.func @transform_2(%arg0: i32) -> (i32, i32, i32) {
    %c0_i32 = arith.constant 0 : i32
    %c0_i32_0 = arith.constant 0 : i32
    %c0_i32_1 = arith.constant 0 : i32
    %c0_i32_2 = arith.constant 0 : i32
    return %c0_i32, %c0_i32_0, %c0_i32_1 : i32, i32, i32
  }
  func.func @transform_3(%arg0: i32) -> (i32, i32, i32) {
    %c0_i32 = arith.constant 0 : i32
    %c0_i32_0 = arith.constant 0 : i32
    %c0_i32_1 = arith.constant 0 : i32
    return %arg0, %c0_i32, %c0_i32_0 : i32, i32, i32
  }
}

</mosaic_0001>

<llo_original>
// kernel: tpu_custom_call.1
$region0: #{tpu_custom_call.1}
  #allocation0 [shape = 'u32[]', space=smem, size = 0x4, offset = 0x4, fixed_abs, tag = 'smem constant byte address 0x4 - core index']
  #allocation1 [shape = 'u32[144,128]{1,0:T(1,128)}', space=vmem, size = 0x12000, scoped, tag = 'internal scratch']
  %s0 = inlined_call_operand.hbm [shape: f32[4,128,128], index: 0, kind: input, shape index: {}]
  %s1 = inlined_call_operand.hbm [shape: bf16[4,128,128], index: 1, kind: input, shape index: {}]
  %s2 = inlined_call_operand.hbm [shape: bf16[2,128,128], index: 2, kind: input, shape index: {}]
  %s3 = inlined_call_operand.hbm [shape: f32[4,128,128], index: 3, kind: output, shape index: {}]
  %s4 = sld [smem:[#allocation0]]
  $region57: #{tpu_custom_call.1} parent=0
    _
  %s6 = ssub.s32 1, %s4
  %s7 = scalar_select 0, %s6, %s4
  $region1: #{tpu_custom_call.1} parent=0
    #allocation2 [shape = 'u8[262144]{0}', space=vmem, size = 0x40000, scoped, tag = 'input window, operand 0']
    #allocation3 [shape = 's32[2]{0}', space=sflag, size = 0x8, scoped, tag = 'scoped memory for tpu_custom_call.1']
    #allocation4 [shape = 's32[2]{0}', space=sflag, size = 0x8, scoped, tag = 'scoped memory for tpu_custom_call.1']
    #allocation5 [shape = 'u8[131072]{0}', space=vmem, size = 0x20000, scoped, tag = 'input window, operand 1']
    #allocation6 [shape = 's32[2]{0}', space=sflag, size = 0x8, scoped, tag = 'scoped memory for tpu_custom_call.1']
    #allocation7 [shape = 'u8[65536]{0}', space=vmem, size = 0x10000, scoped, tag = 'input window, operand 2, single buffered']
    #allocation8 [shape = 'u8[262144]{0}', space=vmem, size = 0x40000, scoped, tag = 'output window, operand 0']
    %8 = vsyncpa [#allocation3], 0
    %s9 = scalar_lea.sflag [#allocation3], 1
    %10 = vsyncpa %s9, 0
    %11 = vsyncpa [#allocation6], 0
    %s12 = scalar_lea.sflag [#allocation6], 1
    %13 = vsyncpa %s12, 0
    %14 = vsyncpa [#allocation4], 0
    %s15 = scalar_lea.sflag [#allocation4], 1
    %16 = vsyncpa %s15, 0
    loop: start=0, step=1, limit=4
    $region2: #{tpu_custom_call.1} parent=1 // loop_pre_header
      _
    $region3: #{tpu_custom_call.1} parent=1 // loop_header
      %s18 = sphi 0, %s22
      %p19 = scmp.ge.s32.totalorder %s18, 4
      %s28 = sphi 0, %s30
      %s31 = sphi 0, %s28
      %s32 = sphi 0, %s31
      %s48 = sphi 0, %s32
      %s54 = sphi 0, %s56
      %s57 = sphi 0, %s54
      %s58 = sphi 0, %s57
      %s74 = sphi 0, %s58
      %s78 = sphi 0, %s78
      %s80 = sphi 0, %s78
      %s81 = sphi 0, %s80
      %s95 = sphi 0, %s81
      %s101 = sphi 0, %s103
      %s104 = sphi 0, %s101
      %s105 = sphi 0, %s104
      %s121 = sphi 0, %s105
    $region4: #{tpu_custom_call.1} parent=1 // loop_header_branch
      %21 = sbr.rel (%p19) target = $region8
    $region5: #{tpu_custom_call.1} parent=1 // loop_body
      %s23 = ssub.s32 %s18, 1
      %s24 = ssub.s32 %s18, 2
      %s25 = sadd.s32 %s18, 1
      %s26 = ssub.s32 %s18, %s25
      %p27 = scmp.eq.s32.totalorder %s26, 0
      %s29 = sadd.s32 %s28, 1
      %s30 = scalar_select %p27, %s28, %s29
      %p33 = pneg %p27
      %p34 = scmp.eq.s32.totalorder %s18, 1
      %p35 = por %p33, %p34
      %p36 = scmp.ne.s32.totalorder %s28, %s31
      %p37 = scmp.eq.s32.totalorder %s18, 0
      %p38 = por %p36, %p37
      %p39 = scmp.ne.s32.totalorder %s28, %s31
      %p40 = scmp.eq.s32.totalorder %s23, 1
      %p41 = por %p39, %p40
      %p42 = scmp.ne.s32.totalorder %s31, %s32
      %p43 = scmp.eq.s32.totalorder %s23, 0
      %p44 = por %p42, %p43
      %p45 = scmp.ne.s32.totalorder %s31, %s32
      %p46 = scmp.eq.s32.totalorder %s24, 1
      %p47 = por %p45, %p46
      %p49 = scmp.ne.s32.totalorder %s32, %s48
      %p50 = scmp.eq.s32.totalorder %s24, 0
      %p51 = por %p49, %p50
      %s52 = ssub.s32 %s18, %s25
      %p53 = scmp.eq.s32.totalorder %s52, 0
      %s55 = sadd.s32 %s54, 1
      %s56 = scalar_select %p53, %s54, %s55
      %p59 = pneg %p53
      %p60 = scmp.eq.s32.totalorder %s18, 1
      %p61 = por %p59, %p60
      %p62 = scmp.ne.s32.totalorder %s54, %s57
      %p63 = scmp.eq.s32.totalorder %s18, 0
      %p64 = por %p62, %p63
      %p65 = scmp.ne.s32.totalorder %s54, %s57
      %p66 = scmp.eq.s32.totalorder %s23, 1
      %p67 = por %p65, %p66
      %p68 = scmp.ne.s32.totalorder %s57, %s58
      %p69 = scmp.eq.s32.totalorder %s23, 0
      %p70 = por %p68, %p69
      %p71 = scmp.ne.s32.totalorder %s57, %s58
      %p72 = scmp.eq.s32.totalorder %s24, 1
      %p73 = por %p71, %p72
      %p75 = scmp.ne.s32.totalorder %s58, %s74
      %p76 = scmp.eq.s32.totalorder %s24, 0
      %p77 = por %p75, %p76
      %s79 = sadd.s32 %s78, 1
      %p82 = scmp.eq.s32.totalorder %s18, 1
      %p83 = scmp.ne.s32.totalorder %s78, %s80
      %p84 = scmp.eq.s32.totalorder %s18, 0
      %p85 = por %p83, %p84
      %p86 = scmp.ne.s32.totalorder %s78, %s80
      %p87 = scmp.eq.s32.totalorder %s23, 1
      %p88 = por %p86, %p87
      %p89 = scmp.ne.s32.totalorder %s80, %s81
      %p90 = scmp.eq.s32.totalorder %s23, 0
      %p91 = por %p89, %p90
      %p92 = scmp.ne.s32.totalorder %s80, %s81
      %p93 = scmp.eq.s32.totalorder %s24, 1
      %p94 = por %p92, %p93
      %p96 = scmp.ne.s32.totalorder %s81, %s95
      %p97 = scmp.eq.s32.totalorder %s24, 0
      %p98 = por %p96, %p97
      %s99 = ssub.s32 %s18, %s25
      %p100 = scmp.eq.s32.totalorder %s99, 0
      %s102 = sadd.s32 %s101, 1
      %s103 = scalar_select %p100, %s101, %s102
      %p106 = pneg %p100
      %p107 = scmp.eq.s32.totalorder %s18, 1
      %p108 = por %p106, %p107
      %p109 = scmp.ne.s32.totalorder %s101, %s104
      %p110 = scmp.eq.s32.totalorder %s18, 0
      %p111 = por %p109, %p110
      %p112 = scmp.ne.s32.totalorder %s101, %s104
      %p113 = scmp.eq.s32.totalorder %s23, 1
      %p114 = por %p112, %p113
      %p115 = scmp.ne.s32.totalorder %s104, %s105
      %p116 = scmp.eq.s32.totalorder %s23, 0
      %p117 = por %p115, %p116
      %p118 = scmp.ne.s32.totalorder %s104, %s105
      %p119 = scmp.eq.s32.totalorder %s24, 1
      %p120 = por %p118, %p119
      %p122 = scmp.ne.s32.totalorder %s105, %s121
      %p123 = scmp.eq.s32.totalorder %s24, 0
      %p124 = por %p122, %p123
      %p125 = scmp.le.s32.totalorder 1, %s18
      %p126 = scmp.lt.s32.totalorder %s18, 3
      %p127 = pnand %p125, %p126
      %p128 = pneg %p127
      // Predicated region
      $region9: #{tpu_custom_call.1} parent=5 // pred_check
        _
      $region10: #{tpu_custom_call.1} parent=5 // pred_check_branch
        %130 = sbr.rel (%p127) target = $region12
      $region11: #{tpu_custom_call.1} parent=5 // pred_region
        %s131 = ssub.s32 %s18, 1
        // Predicated region
        $region13: #{tpu_custom_call.1} parent=11 // pred_check
          %p132 = pneg %p91
        $region14: #{tpu_custom_call.1} parent=11 // pred_check_branch
          %134 = sbr.rel (%p132) target = $region16
        $region15: #{tpu_custom_call.1} parent=11 // pred_region
          %s136 = ssub.s32 2048, 2048
          %137 = vsyncadd [#allocation6], %s136
          %s138 = sshll.u32 [#allocation7], 4
          %s139 = int_to_ptr.vmem [resolvable:$true] %s138
          %144 = dma.hbm_to_vmem [thread:$0]  %s2, 2048, %s139, [#allocation6], 64, 64, 4
        $region16: #{tpu_custom_call.1} parent=11 // pred_fallthru
          _
      $region12: #{tpu_custom_call.1} parent=5 // pred_fallthru
        _
      %p145 = scmp.lt.s32.totalorder %s18, 2
      // Predicated region
      $region17: #{tpu_custom_call.1} parent=5 // pred_check
        %p146 = pneg %p145
      $region18: #{tpu_custom_call.1} parent=5 // pred_check_branch
        %148 = sbr.rel (%p146) target = $region20
      $region19: #{tpu_custom_call.1} parent=5 // pred_region
        // Predicated region
        $region21: #{tpu_custom_call.1} parent=19 // pred_check
          %p149 = pneg %p38
        $region22: #{tpu_custom_call.1} parent=19 // pred_check_branch
          %151 = sbr.rel (%p149) target = $region24
        $region23: #{tpu_custom_call.1} parent=19 // pred_region
          %s152 = sand.u32 %s28, 1
          %s153 = scalar_lea.sflag [#allocation3], %s152
          %s154 = sand.u32 %s28, 1
          %s155 = smul.addr %s154, 256
          %s156 = scalar_lea.vmem [#allocation2], %s155
          %s157 = smul.u32 2, %s18
          %s159 = ssub.s32 4096, 4096
          %160 = vsyncadd %s153, %s159
          %s161 = smul.addr %s157, 16
          %s162 = smul.addr %s161, 128
          %s163 = scalar_lea.hbm %s0, %s162
          %s164 = sshll.u32 %s156, 4
          %s165 = int_to_ptr.vmem [resolvable:$true] %s164
          %170 = dma.hbm_to_vmem [thread:$0]  %s163, 4096, %s165, %s153, 128, 128, 8
        $region24: #{tpu_custom_call.1} parent=19 // pred_fallthru
          _
        // Predicated region
        $region25: #{tpu_custom_call.1} parent=19 // pred_check
          %p171 = pneg %p64
        $region26: #{tpu_custom_call.1} parent=19 // pred_check_branch
          %173 = sbr.rel (%p171) target = $region28
        $region27: #{tpu_custom_call.1} parent=19 // pred_region
          %s174 = sand.u32 %s18, 1
          %s175 = scalar_lea.sflag [#allocation6], %s174
          %s176 = sand.u32 %s54, 1
          %s177 = smul.addr %s176, 128
          %s178 = scalar_lea.vmem [#allocation5], %s177
          %s179 = smul.u32 2, %s18
          %s181 = ssub.s32 2048, 2048
          %182 = vsyncadd %s175, %s181
          %s183 = smul.addr %s179, 16
          %s184 = smul.addr %s183, 64
          %s185 = scalar_lea.hbm %s1, %s184
          %s186 = sshll.u32 %s178, 4
          %s187 = int_to_ptr.vmem [resolvable:$true] %s186
          %192 = dma.hbm_to_vmem [thread:$0]  %s185, 2048, %s187, %s175, 64, 64, 4
        $region28: #{tpu_custom_call.1} parent=19 // pred_fallthru
          _
      $region20: #{tpu_custom_call.1} parent=5 // pred_fallthru
        _
      %p193 = scmp.le.s32.totalorder 1, %s18
      %p194 = scmp.lt.s32.totalorder %s18, 3
      %p195 = pnand %p193, %p194
      %p196 = pneg %p195
      // Predicated region
      $region29: #{tpu_custom_call.1} parent=5 // pred_check
        _
      $region30: #{tpu_custom_call.1} parent=5 // pred_check_branch
        %198 = sbr.rel (%p195) target = $region32
      $region31: #{tpu_custom_call.1} parent=5 // pred_region
        %s199 = ssub.s32 %s18, 1
        %s200 = sand.u32 %s31, 1
        %s201 = scalar_lea.sflag [#allocation3], %s200
        %s202 = sand.u32 %s31, 1
        %s203 = smul.addr %s202, 256
        %s204 = scalar_lea.vmem [#allocation2], %s203
        // Predicated region
        $region33: #{tpu_custom_call.1} parent=31 // pred_check
          %p205 = pneg %p44
        $region34: #{tpu_custom_call.1} parent=31 // pred_check_branch
          %207 = sbr.rel (%p205) target = $region36
        $region35: #{tpu_custom_call.1} parent=31 // pred_region
          %208 = dma.done %s201, 4096
        $region36: #{tpu_custom_call.1} parent=31 // pred_fallthru
          _
        %s209 = sand.u32 %s23, 1
        %s210 = scalar_lea.sflag [#allocation6], %s209
        %s211 = sand.u32 %s57, 1
        %s212 = smul.addr %s211, 128
        %s213 = scalar_lea.vmem [#allocation5], %s212
        // Predicated region
        $region37: #{tpu_custom_call.1} parent=31 // pred_check
          %p214 = pneg %p70
        $region38: #{tpu_custom_call.1} parent=31 // pred_check_branch
          %216 = sbr.rel (%p214) target = $region40
        $region39: #{tpu_custom_call.1} parent=31 // pred_region
          %217 = dma.done %s210, 2048
        $region40: #{tpu_custom_call.1} parent=31 // pred_fallthru
          _
        // Predicated region
        $region41: #{tpu_custom_call.1} parent=31 // pred_check
          %p218 = pneg %p91
        $region42: #{tpu_custom_call.1} parent=31 // pred_check_branch
          %220 = sbr.rel (%p218) target = $region44
        $region43: #{tpu_custom_call.1} parent=31 // pred_region
          %221 = dma.done [#allocation6], 2048
        $region44: #{tpu_custom_call.1} parent=31 // pred_fallthru
          _
        %s222 = sand.u32 %s31, 1
        %s223 = scalar_lea.sflag [#allocation3], %s222
        %s224 = sand.u32 %s31, 1
        %s225 = smul.addr %s224, 256
        %s226 = scalar_lea.vmem [#allocation2], %s225
        %p227 = pneg %p44
        %p228 = pneg %p41
        %s229 = sand.u32 %s23, 1
        %s230 = scalar_lea.sflag [#allocation6], %s229
        %s231 = sand.u32 %s57, 1
        %s232 = smul.addr %s231, 128
        %s233 = scalar_lea.vmem [#allocation5], %s232
        %p234 = pneg %p70
        %p235 = pneg %p67
        %p236 = pneg %p91
        %p237 = pneg %p88
        %p238 = pneg %p117
        %p239 = pneg %p114
        %s240 = sand.u32 %s104, 1
        %s241 = scalar_lea.sflag [#allocation4], %s240
        %s242 = sand.u32 %s104, 1
        %s243 = smul.addr %s242, 256
        %s244 = scalar_lea.vmem [#allocation8], %s243
        %s245 = smul.u32 2, %s23
        %s246 = smul.u32 2, %s23
        %s247 = smul.u32 2, %s23
        %v249 = vld [vmem:[%s204] sm:$0xff]
        %v250 = vld [vmem:[%s204 + $0x8] sm:$0xff]
        %v251 = vld [vmem:[%s204 + $0x10] sm:$0xff]
        %v252 = vld [vmem:[%s204 + $0x18] sm:$0xff]
        %v253 = vld [vmem:[%s204 + $0x20] sm:$0xff]
        %v254 = vld [vmem:[%s204 + $0x28] sm:$0xff]
        %v255 = vld [vmem:[%s204 + $0x30] sm:$0xff]
        %v256 = vld [vmem:[%s204 + $0x38] sm:$0xff]
        %v257 = vld [vmem:[%s204 + $0x40] sm:$0xff]
        %v258 = vld [vmem:[%s204 + $0x48] sm:$0xff]
        %v259 = vld [vmem:[%s204 + $0x50] sm:$0xff]
        %v260 = vld [vmem:[%s204 + $0x58] sm:$0xff]
        %v261 = vld [vmem:[%s204 + $0x60] sm:$0xff]
        %v262 = vld [vmem:[%s204 + $0x68] sm:$0xff]
        %v263 = vld [vmem:[%s204 + $0x70] sm:$0xff]
        %v264 = vld [vmem:[%s204 + $0x78] sm:$0xff]
        %v265 = vld [vmem:[%s204 + $0x80] sm:$0xff]
        %v266 = vld [vmem:[%s204 + $0x88] sm:$0xff]
        %v267 = vld [vmem:[%s204 + $0x90] sm:$0xff]
        %v268 = vld [vmem:[%s204 + $0x98] sm:$0xff]
        %v269 = vld [vmem:[%s204 + $0xa0] sm:$0xff]
        %v270 = vld [vmem:[%s204 + $0xa8] sm:$0xff]
        %v271 = vld [vmem:[%s204 + $0xb0] sm:$0xff]
        %v272 = vld [vmem:[%s204 + $0xb8] sm:$0xff]
        %v273 = vld [vmem:[%s204 + $0xc0] sm:$0xff]
        %v274 = vld [vmem:[%s204 + $0xc8] sm:$0xff]
        %v275 = vld [vmem:[%s204 + $0xd0] sm:$0xff]
        %v276 = vld [vmem:[%s204 + $0xd8] sm:$0xff]
        %v277 = vld [vmem:[%s204 + $0xe0] sm:$0xff]
        %v278 = vld [vmem:[%s204 + $0xe8] sm:$0xff]
        %v279 = vld [vmem:[%s204 + $0xf0] sm:$0xff]
        %v280 = vld [vmem:[%s204 + $0xf8] sm:$0xff]
        %v281 = vld [vmem:[%s213] sm:$0xf]
        %v282 = vld [vmem:[%s213 + $0x4] sm:$0xf]
        %v283 = vld [vmem:[%s213 + $0x8] sm:$0xf]
        %v284 = vld [vmem:[%s213 + $0xc] sm:$0xf]
        %v285 = vld [vmem:[%s213 + $0x10] sm:$0xf]
        %v286 = vld [vmem:[%s213 + $0x14] sm:$0xf]
        %v287 = vld [vmem:[%s213 + $0x18] sm:$0xf]
        %v288 = vld [vmem:[%s213 + $0x1c] sm:$0xf]
        %v289 = vld [vmem:[%s213 + $0x20] sm:$0xf]
        %v290 = vld [vmem:[%s213 + $0x24] sm:$0xf]
        %v291 = vld [vmem:[%s213 + $0x28] sm:$0xf]
        %v292 = vld [vmem:[%s213 + $0x2c] sm:$0xf]
        %v293 = vld [vmem:[%s213 + $0x30] sm:$0xf]
        %v294 = vld [vmem:[%s213 + $0x34] sm:$0xf]
        %v295 = vld [vmem:[%s213 + $0x38] sm:$0xf]
        %v296 = vld [vmem:[%s213 + $0x3c] sm:$0xf]
        %v297 = vld [vmem:[%s213 + $0x40] sm:$0xf]
        %v298 = vld [vmem:[%s213 + $0x44] sm:$0xf]
        %v299 = vld [vmem:[%s213 + $0x48] sm:$0xf]
        %v300 = vld [vmem:[%s213 + $0x4c] sm:$0xf]
        %v301 = vld [vmem:[%s213 + $0x50] sm:$0xf]
        %v302 = vld [vmem:[%s213 + $0x54] sm:$0xf]
        %v303 = vld [vmem:[%s213 + $0x58] sm:$0xf]
        %v304 = vld [vmem:[%s213 + $0x5c] sm:$0xf]
        %v305 = vld [vmem:[%s213 + $0x60] sm:$0xf]
        %v306 = vld [vmem:[%s213 + $0x64] sm:$0xf]
        %v307 = vld [vmem:[%s213 + $0x68] sm:$0xf]
        %v308 = vld [vmem:[%s213 + $0x6c] sm:$0xf]
        %v309 = vld [vmem:[%s213 + $0x70] sm:$0xf]
        %v310 = vld [vmem:[%s213 + $0x74] sm:$0xf]
        %v311 = vld [vmem:[%s213 + $0x78] sm:$0xf]
        %v312 = vld [vmem:[%s213 + $0x7c] sm:$0xf]
        %v313 = vpack.c.bf16 %v250, %v249
        %v314 = vpack.c.bf16 %v252, %v251
        %v315 = vpack.c.bf16 %v254, %v253
        %v316 = vpack.c.bf16 %v256, %v255
        %v317 = vpack.c.bf16 %v258, %v257
        %v318 = vpack.c.bf16 %v260, %v259
        %v319 = vpack.c.bf16 %v262, %v261
        %v320 = vpack.c.bf16 %v264, %v263
        %v321 = vpack.c.bf16 %v266, %v265
        %v322 = vpack.c.bf16 %v268, %v267
        %v323 = vpack.c.bf16 %v270, %v269
        %v324 = vpack.c.bf16 %v272, %v271
        %v325 = vpack.c.bf16 %v274, %v273
        %v326 = vpack.c.bf16 %v276, %v275
        %v327 = vpack.c.bf16 %v278, %v277
        %v328 = vpack.c.bf16 %v280, %v279
        %v329 = vld [vmem:[#allocation7] sm:$0xf]
        %v330 = vld [vmem:[#allocation7 + $0x4] sm:$0xf]
        %v331 = vld [vmem:[#allocation7 + $0x8] sm:$0xf]
        %v332 = vld [vmem:[#allocation7 + $0xc] sm:$0xf]
        %v333 = vld [vmem:[#allocation7 + $0x10] sm:$0xf]
        %v334 = vld [vmem:[#allocation7 + $0x14] sm:$0xf]
        %v335 = vld [vmem:[#allocation7 + $0x18] sm:$0xf]
        %v336 = vld [vmem:[#allocation7 + $0x1c] sm:$0xf]
        %v337 = vld [vmem:[#allocation7 + $0x20] sm:$0xf]
        %v338 = vld [vmem:[#allocation7 + $0x24] sm:$0xf]
        %v339 = vld [vmem:[#allocation7 + $0x28] sm:$0xf]
        %v340 = vld [vmem:[#allocation7 + $0x2c] sm:$0xf]
        %v341 = vld [vmem:[#allocation7 + $0x30] sm:$0xf]
        %v342 = vld [vmem:[#allocation7 + $0x34] sm:$0xf]
        %v343 = vld [vmem:[#allocation7 + $0x38] sm:$0xf]
        %v344 = vld [vmem:[#allocation7 + $0x3c] sm:$0xf]
        %v361 = vunpack.c.l.b16 %v329
        %v362 = vunpack.c.l.b16 %v330
        %v363 = vunpack.c.l.b16 %v331
        %v364 = vunpack.c.l.b16 %v332
        %v365 = vunpack.c.l.b16 %v333
        %v366 = vunpack.c.l.b16 %v334
        %v367 = vunpack.c.l.b16 %v335
        %v368 = vunpack.c.l.b16 %v336
        %v369 = vunpack.c.l.b16 %v337
        %v370 = vunpack.c.l.b16 %v338
        %v371 = vunpack.c.l.b16 %v339
        %v372 = vunpack.c.l.b16 %v340
        %v373 = vunpack.c.l.b16 %v341
        %v374 = vunpack.c.l.b16 %v342
        %v375 = vunpack.c.l.b16 %v343
        %v376 = vunpack.c.l.b16 %v344
        %v377 = vpack.c.b16 %v362, %v361
        %v378 = vpack.c.b16 %v364, %v363
        %v379 = vpack.c.b16 %v366, %v365
        %v380 = vpack.c.b16 %v368, %v367
        %v381 = vpack.c.b16 %v370, %v369
        %v382 = vpack.c.b16 %v372, %v371
        %v383 = vpack.c.b16 %v374, %v373
        %v384 = vpack.c.b16 %v376, %v375
        %393 = vmatprep.subr.bf16.mxu0 0
        %394 = vmatpush1.bf16.msra.mxu0 %v377
        %395 = vmatprep.subr.bf16.mxu0 0
        %396 = vmatpush1.bf16.msra.mxu0 %v378
        %397 = vmatprep.subr.bf16.mxu0 0
        %398 = vmatpush1.bf16.msra.mxu0 %v379
        %399 = vmatprep.subr.bf16.mxu0 0
        %400 = vmatpush1.bf16.msra.mxu0 %v380
        %401 = vmatprep.subr.bf16.mxu0 0
        %402 = vmatpush1.bf16.msra.mxu0 %v381
        %403 = vmatprep.subr.bf16.mxu0 0
        %404 = vmatpush1.bf16.msra.mxu0 %v382
        %405 = vmatprep.subr.bf16.mxu0 0
        %406 = vmatpush1.bf16.msra.mxu0 %v383
        %407 = vmatprep.subr.bf16.mxu0 0
        %408 = vmatpush1.bf16.msra.mxu0 %v384
        %409 = vmatprep.subr.bf16.mxu0 0
        %410 = vmatpush1.bf16.msra.mxu0 0
        %411 = vmatprep.subr.bf16.mxu0 0
        %412 = vmatpush1.bf16.msra.mxu0 0
        %413 = vmatprep.subr.bf16.mxu0 0
        %414 = vmatpush1.bf16.msra.mxu0 0
        %415 = vmatprep.subr.bf16.mxu0 0
        %416 = vmatpush1.bf16.msra.mxu0 0
        %417 = vmatprep.subr.bf16.mxu0 0
        %418 = vmatpush1.bf16.msra.mxu0 0
        %419 = vmatprep.subr.bf16.mxu0 0
        %420 = vmatpush1.bf16.msra.mxu0 0
        %421 = vmatprep.subr.bf16.mxu0 0
        %422 = vmatpush1.bf16.msra.mxu0 0
        %423 = vmatprep.subr.bf16.mxu0 0
        %424 = vmatpush1.bf16.msra.mxu0 0
        %425 = vmatprep.mubr.bf16.mxu0 0
        %426 = vmatmul.mubr.bf16.gmra.mrb[0].mxu0 %v313
        %v427 = vpop.f32.mrb[0].mxu0
        %v428 = vadd.f32 0.0, %v427
        %v429 = vpop.f32.mrb[0].mxu0
        %v430 = vpop.f32.mrb[0].mxu0
        %v431 = vadd.f32 0.0, %v430
        %v432 = vpop.f32.mrb[0].mxu0
        %433 = vmatprep.mubr.bf16.mxu0 0
        %434 = vmatmul.mubr.bf16.gmra.mrb[0].mxu0 %v314
        %v435 = vpop.f32.mrb[0].mxu0
        %v436 = vadd.f32 0.0, %v435
        %v437 = vpop.f32.mrb[0].mxu0
        %v438 = vpop.f32.mrb[0].mxu0
        %v439 = vadd.f32 0.0, %v438
        %v440 = vpop.f32.mrb[0].mxu0
        %441 = vmatprep.mubr.bf16.mxu0 0
        %442 = vmatmul.mubr.bf16.gmra.mrb[0].mxu0 %v315
        %v443 = vpop.f32.mrb[0].mxu0
        %v444 = vadd.f32 0.0, %v443
        %v445 = vpop.f32.mrb[0].mxu0
        %v446 = vpop.f32.mrb[0].mxu0
        %v447 = vadd.f32 0.0, %v446
        %v448 = vpop.f32.mrb[0].mxu0
        %449 = vmatprep.mubr.bf16.mxu0 0
        %450 = vmatmul.mubr.bf16.gmra.mrb[0].mxu0 %v316
        %v451 = vpop.f32.mrb[0].mxu0
        %v452 = vadd.f32 0.0, %v451
        %v453 = vpop.f32.mrb[0].mxu0
        %v454 = vpop.f32.mrb[0].mxu0
        %v455 = vadd.f32 0.0, %v454
        %v456 = vpop.f32.mrb[0].mxu0
        %457 = vmatprep.mubr.bf16.mxu0 0
        %458 = vmatmul.mubr.bf16.gmra.mrb[0].mxu0 %v317
        %v459 = vpop.f32.mrb[0].mxu0
        %v460 = vadd.f32 0.0, %v459
        %v461 = vpop.f32.mrb[0].mxu0
        %v462 = vpop.f32.mrb[0].mxu0
        %v463 = vadd.f32 0.0, %v462
        %v464 = vpop.f32.mrb[0].mxu0
        %465 = vmatprep.mubr.bf16.mxu0 0
        %466 = vmatmul.mubr.bf16.gmra.mrb[0].mxu0 %v318
        %v467 = vpop.f32.mrb[0].mxu0
        %v468 = vadd.f32 0.0, %v467
        %v469 = vpop.f32.mrb[0].mxu0
        %v470 = vpop.f32.mrb[0].mxu0
        %v471 = vadd.f32 0.0, %v470
        %v472 = vpop.f32.mrb[0].mxu0
        %473 = vmatprep.mubr.bf16.mxu0 0
        %474 = vmatmul.mubr.bf16.gmra.mrb[0].mxu0 %v319
        %v475 = vpop.f32.mrb[0].mxu0
        %v476 = vadd.f32 0.0, %v475
        %v477 = vpop.f32.mrb[0].mxu0
        %v478 = vpop.f32.mrb[0].mxu0
        %v479 = vadd.f32 0.0, %v478
        %v480 = vpop.f32.mrb[0].mxu0
        %481 = vmatprep.mubr.bf16.mxu0 0
        %482 = vmatmul.mubr.bf16.gmra.mrb[0].mxu0 %v320
        %v483 = vpop.f32.mrb[0].mxu0
        %v484 = vadd.f32 0.0, %v483
        %v485 = vpop.f32.mrb[0].mxu0
        %v486 = vpop.f32.mrb[0].mxu0
        %v487 = vadd.f32 0.0, %v486
        %v488 = vpop.f32.mrb[0].mxu0
        %489 = vmatprep.mubr.bf16.mxu0 0
        %490 = vmatmul.mubr.bf16.gmra.mrb[0].mxu0 %v321
        %v491 = vpop.f32.mrb[0].mxu0
        %v492 = vadd.f32 0.0, %v491
        %v493 = vpop.f32.mrb[0].mxu0
        %v494 = vpop.f32.mrb[0].mxu0
        %v495 = vadd.f32 0.0, %v494
        %v496 = vpop.f32.mrb[0].mxu0
        %497 = vmatprep.mubr.bf16.mxu0 0
        %498 = vmatmul.mubr.bf16.gmra.mrb[0].mxu0 %v322
        %v499 = vpop.f32.mrb[0].mxu0
        %v500 = vadd.f32 0.0, %v499
        %v501 = vpop.f32.mrb[0].mxu0
        %v502 = vpop.f32.mrb[0].mxu0
        %v503 = vadd.f32 0.0, %v502
        %v504 = vpop.f32.mrb[0].mxu0
        %505 = vmatprep.mubr.bf16.mxu0 0
        %506 = vmatmul.mubr.bf16.gmra.mrb[0].mxu0 %v323
        %v507 = vpop.f32.mrb[0].mxu0
        %v508 = vadd.f32 0.0, %v507
        %v509 = vpop.f32.mrb[0].mxu0
        %v510 = vpop.f32.mrb[0].mxu0
        %v511 = vadd.f32 0.0, %v510
        %v512 = vpop.f32.mrb[0].mxu0
        %513 = vmatprep.mubr.bf16.mxu0 0
        %514 = vmatmul.mubr.bf16.gmra.mrb[0].mxu0 %v324
        %v515 = vpop.f32.mrb[0].mxu0
        %v516 = vadd.f32 0.0, %v515
        %v517 = vpop.f32.mrb[0].mxu0
        %v518 = vpop.f32.mrb[0].mxu0
        %v519 = vadd.f32 0.0, %v518
        %v520 = vpop.f32.mrb[0].mxu0
        %521 = vmatprep.mubr.bf16.mxu0 0
        %522 = vmatmul.mubr.bf16.gmra.mrb[0].mxu0 %v325
        %v523 = vpop.f32.mrb[0].mxu0
        %v524 = vadd.f32 0.0, %v523
        %v525 = vpop.f32.mrb[0].mxu0
        %v526 = vpop.f32.mrb[0].mxu0
        %v527 = vadd.f32 0.0, %v526
        %v528 = vpop.f32.mrb[0].mxu0
        %529 = vmatprep.mubr.bf16.mxu0 0
        %530 = vmatmul.mubr.bf16.gmra.mrb[0].mxu0 %v326
        %v531 = vpop.f32.mrb[0].mxu0
        %v532 = vadd.f32 0.0, %v531
        %v533 = vpop.f32.mrb[0].mxu0
        %v534 = vpop.f32.mrb[0].mxu0
        %v535 = vadd.f32 0.0, %v534
        %v536 = vpop.f32.mrb[0].mxu0
        %537 = vmatprep.mubr.bf16.mxu0 0
        %538 = vmatmul.mubr.bf16.gmra.mrb[0].mxu0 %v327
        %v539 = vpop.f32.mrb[0].mxu0
        %v540 = vadd.f32 0.0, %v539
        %v541 = vpop.f32.mrb[0].mxu0
        %v542 = vpop.f32.mrb[0].mxu0
        %v543 = vadd.f32 0.0, %v542
        %v544 = vpop.f32.mrb[0].mxu0
        %545 = vmatprep.mubr.bf16.mxu0 0
        %546 = vmatmul.mubr.bf16.gmra.mrb[0].mxu0 %v328
        %v547 = vpop.f32.mrb[0].mxu0
        %v548 = vadd.f32 0.0, %v547
        %v549 = vpop.f32.mrb[0].mxu0
        %v550 = vpop.f32.mrb[0].mxu0
        %v551 = vadd.f32 0.0, %v550
        %v552 = vpop.f32.mrb[0].mxu0
        %553 = vdwg.mxu0
        %v554 = vpack.c.bf16 %v431, %v428
        %v555 = vpack.c.bf16 %v439, %v436
        %v556 = vpack.c.bf16 %v447, %v444
        %v557 = vpack.c.bf16 %v455, %v452
        %v558 = vpack.c.bf16 %v463, %v460
        %v559 = vpack.c.bf16 %v471, %v468
        %v560 = vpack.c.bf16 %v479, %v476
        %v561 = vpack.c.bf16 %v487, %v484
        %v562 = vpack.c.bf16 %v495, %v492
        %v563 = vpack.c.bf16 %v503, %v500
        %v564 = vpack.c.bf16 %v511, %v508
        %v565 = vpack.c.bf16 %v519, %v516
        %v566 = vpack.c.bf16 %v527, %v524
        %v567 = vpack.c.bf16 %v535, %v532
        %v568 = vpack.c.bf16 %v543, %v540
        %v569 = vpack.c.bf16 %v551, %v548
        %v586 = vunpack.c.l.b16 %v281
        %v587 = vunpack.c.l.b16 %v282
        %v588 = vunpack.c.l.b16 %v283
        %v589 = vunpack.c.l.b16 %v284
        %v590 = vunpack.c.l.b16 %v285
        %v591 = vunpack.c.l.b16 %v286
        %v592 = vunpack.c.l.b16 %v287
        %v593 = vunpack.c.l.b16 %v288
        %v594 = vunpack.c.l.b16 %v289
        %v595 = vunpack.c.l.b16 %v290
        %v596 = vunpack.c.l.b16 %v291
        %v597 = vunpack.c.l.b16 %v292
        %v598 = vunpack.c.l.b16 %v293
        %v599 = vunpack.c.l.b16 %v294
        %v600 = vunpack.c.l.b16 %v295
        %v601 = vunpack.c.l.b16 %v296
        %v602 = vpack.c.b16 %v587, %v586
        %v603 = vpack.c.b16 %v589, %v588
        %v604 = vpack.c.b16 %v591, %v590
        %v605 = vpack.c.b16 %v593, %v592
        %v606 = vpack.c.b16 %v595, %v594
        %v607 = vpack.c.b16 %v597, %v596
        %v608 = vpack.c.b16 %v599, %v598
        %v609 = vpack.c.b16 %v601, %v600
        %618 = vmatprep.subr.bf16.mxu0 0
        %619 = vmatpush1.bf16.msra.mxu0 %v554
        %620 = vmatprep.subr.bf16.mxu0 0
        %621 = vmatpush1.bf16.msra.mxu0 %v555
        %622 = vmatprep.subr.bf16.mxu0 0
        %623 = vmatpush1.bf16.msra.mxu0 %v556
        %624 = vmatprep.subr.bf16.mxu0 0
        %625 = vmatpush1.bf16.msra.mxu0 %v557
        %626 = vmatprep.subr.bf16.mxu0 0
        %627 = vmatpush1.bf16.msra.mxu0 %v558
        %628 = vmatprep.subr.bf16.mxu0 0
        %629 = vmatpush1.bf16.msra.mxu0 %v559
        %630 = vmatprep.subr.bf16.mxu0 0
        %631 = vmatpush1.bf16.msra.mxu0 %v560
        %632 = vmatprep.subr.bf16.mxu0 0
        %633 = vmatpush1.bf16.msra.mxu0 %v561
        %634 = vmatprep.subr.bf16.mxu0 0
        %635 = vmatpush1.bf16.msra.mxu0 0
        %636 = vmatprep.subr.bf16.mxu0 0
        %637 = vmatpush1.bf16.msra.mxu0 0
        %638 = vmatprep.subr.bf16.mxu0 0
        %639 = vmatpush1.bf16.msra.mxu0 0
        %640 = vmatprep.subr.bf16.mxu0 0
        %641 = vmatpush1.bf16.msra.mxu0 0
        %642 = vmatprep.subr.bf16.mxu0 0
        %643 = vmatpush1.bf16.msra.mxu0 0
        %644 = vmatprep.subr.bf16.mxu0 0
        %645 = vmatpush1.bf16.msra.mxu0 0
        %646 = vmatprep.subr.bf16.mxu0 0
        %647 = vmatpush1.bf16.msra.mxu0 0
        %648 = vmatprep.subr.bf16.mxu0 0
        %649 = vmatpush1.bf16.msra.mxu0 0
        %650 = vmatprep.mubr.bf16.mxu0 0
        %651 = vmatmul.mubr.bf16.gmra.mrb[0].mxu0 %v602
        %v652 = vpop.f32.mrb[0].mxu0
        %v653 = vadd.f32 0.0, %v652
        %v654 = vpop.f32.mrb[0].mxu0
        %v655 = vpop.f32.mrb[0].mxu0
        %v656 = vadd.f32 0.0, %v655
        %v657 = vpop.f32.mrb[0].mxu0
        %658 = vmatprep.mubr.bf16.mxu0 0
        %659 = vmatmul.mubr.bf16.gmra.mrb[0].mxu0 %v603
        %v660 = vpop.f32.mrb[0].mxu0
        %v661 = vadd.f32 0.0, %v660
        %v662 = vpop.f32.mrb[0].mxu0
        %v663 = vpop.f32.mrb[0].mxu0
        %v664 = vadd.f32 0.0, %v663
        %v665 = vpop.f32.mrb[0].mxu0
        %666 = vmatprep.mubr.bf16.mxu0 0
        %667 = vmatmul.mubr.bf16.gmra.mrb[0].mxu0 %v604
        %v668 = vpop.f32.mrb[0].mxu0
        %v669 = vadd.f32 0.0, %v668
        %v670 = vpop.f32.mrb[0].mxu0
        %v671 = vpop.f32.mrb[0].mxu0
        %v672 = vadd.f32 0.0, %v671
        %v673 = vpop.f32.mrb[0].mxu0
        %674 = vmatprep.mubr.bf16.mxu0 0
        %675 = vmatmul.mubr.bf16.gmra.mrb[0].mxu0 %v605
        %v676 = vpop.f32.mrb[0].mxu0
        %v677 = vadd.f32 0.0, %v676
        %v678 = vpop.f32.mrb[0].mxu0
        %v679 = vpop.f32.mrb[0].mxu0
        %v680 = vadd.f32 0.0, %v679
        %v681 = vpop.f32.mrb[0].mxu0
        %682 = vmatprep.mubr.bf16.mxu0 0
        %683 = vmatmul.mubr.bf16.gmra.mrb[0].mxu0 %v606
        %v684 = vpop.f32.mrb[0].mxu0
        %v685 = vadd.f32 0.0, %v684
        %v686 = vpop.f32.mrb[0].mxu0
        %v687 = vpop.f32.mrb[0].mxu0
        %v688 = vadd.f32 0.0, %v687
        %v689 = vpop.f32.mrb[0].mxu0
        %690 = vmatprep.mubr.bf16.mxu0 0
        %691 = vmatmul.mubr.bf16.gmra.mrb[0].mxu0 %v607
        %v692 = vpop.f32.mrb[0].mxu0
        %v693 = vadd.f32 0.0, %v692
        %v694 = vpop.f32.mrb[0].mxu0
        %v695 = vpop.f32.mrb[0].mxu0
        %v696 = vadd.f32 0.0, %v695
        %v697 = vpop.f32.mrb[0].mxu0
        %698 = vmatprep.mubr.bf16.mxu0 0
        %699 = vmatmul.mubr.bf16.gmra.mrb[0].mxu0 %v608
        %v700 = vpop.f32.mrb[0].mxu0
        %v701 = vadd.f32 0.0, %v700
        %v702 = vpop.f32.mrb[0].mxu0
        %v703 = vpop.f32.mrb[0].mxu0
        %v704 = vadd.f32 0.0, %v703
        %v705 = vpop.f32.mrb[0].mxu0
        %706 = vmatprep.mubr.bf16.mxu0 0
        %707 = vmatmul.mubr.bf16.gmra.mrb[0].mxu0 %v609
        %v708 = vpop.f32.mrb[0].mxu0
        %v709 = vadd.f32 0.0, %v708
        %v710 = vpop.f32.mrb[0].mxu0
        %v711 = vpop.f32.mrb[0].mxu0
        %v712 = vadd.f32 0.0, %v711
        %v713 = vpop.f32.mrb[0].mxu0
        %714 = vdwg.mxu0
        %v731 = vunpack.c.l.b16 %v297
        %v732 = vunpack.c.l.b16 %v298
        %v733 = vunpack.c.l.b16 %v299
        %v734 = vunpack.c.l.b16 %v300
        %v735 = vunpack.c.l.b16 %v301
        %v736 = vunpack.c.l.b16 %v302
        %v737 = vunpack.c.l.b16 %v303
        %v738 = vunpack.c.l.b16 %v304
        %v739 = vunpack.c.l.b16 %v305
        %v740 = vunpack.c.l.b16 %v306
        %v741 = vunpack.c.l.b16 %v307
        %v742 = vunpack.c.l.b16 %v308
        %v743 = vunpack.c.l.b16 %v309
        %v744 = vunpack.c.l.b16 %v310
        %v745 = vunpack.c.l.b16 %v311
        %v746 = vunpack.c.l.b16 %v312
        %v747 = vpack.c.b16 %v732, %v731
        %v748 = vpack.c.b16 %v734, %v733
        %v749 = vpack.c.b16 %v736, %v735
        %v750 = vpack.c.b16 %v738, %v737
        %v751 = vpack.c.b16 %v740, %v739
        %v752 = vpack.c.b16 %v742, %v741
        %v753 = vpack.c.b16 %v744, %v743
        %v754 = vpack.c.b16 %v746, %v745
        %763 = vmatprep.subr.bf16.mxu0 0
        %764 = vmatpush1.bf16.msra.mxu0 %v562
        %765 = vmatprep.subr.bf16.mxu0 0
        %766 = vmatpush1.bf16.msra.mxu0 %v563
        %767 = vmatprep.subr.bf16.mxu0 0
        %768 = vmatpush1.bf16.msra.mxu0 %v564
        %769 = vmatprep.subr.bf16.mxu0 0
        %770 = vmatpush1.bf16.msra.mxu0 %v565
        %771 = vmatprep.subr.bf16.mxu0 0
        %772 = vmatpush1.bf16.msra.mxu0 %v566
        %773 = vmatprep.subr.bf16.mxu0 0
        %774 = vmatpush1.bf16.msra.mxu0 %v567
        %775 = vmatprep.subr.bf16.mxu0 0
        %776 = vmatpush1.bf16.msra.mxu0 %v568
        %777 = vmatprep.subr.bf16.mxu0 0
        %778 = vmatpush1.bf16.msra.mxu0 %v569
        %779 = vmatprep.subr.bf16.mxu0 0
        %780 = vmatpush1.bf16.msra.mxu0 0
        %781 = vmatprep.subr.bf16.mxu0 0
        %782 = vmatpush1.bf16.msra.mxu0 0
        %783 = vmatprep.subr.bf16.mxu0 0
        %784 = vmatpush1.bf16.msra.mxu0 0
        %785 = vmatprep.subr.bf16.mxu0 0
        %786 = vmatpush1.bf16.msra.mxu0 0
        %787 = vmatprep.subr.bf16.mxu0 0
        %788 = vmatpush1.bf16.msra.mxu0 0
        %789 = vmatprep.subr.bf16.mxu0 0
        %790 = vmatpush1.bf16.msra.mxu0 0
        %791 = vmatprep.subr.bf16.mxu0 0
        %792 = vmatpush1.bf16.msra.mxu0 0
        %793 = vmatprep.subr.bf16.mxu0 0
        %794 = vmatpush1.bf16.msra.mxu0 0
        %795 = vmatprep.mubr.bf16.mxu0 0
        %796 = vmatmul.mubr.bf16.gmra.mrb[0].mxu0 %v747
        %v797 = vpop.f32.mrb[0].mxu0
        %v798 = vadd.f32 0.0, %v797
        %v799 = vpop.f32.mrb[0].mxu0
        %v800 = vpop.f32.mrb[0].mxu0
        %v801 = vadd.f32 0.0, %v800
        %v802 = vpop.f32.mrb[0].mxu0
        %803 = vmatprep.mubr.bf16.mxu0 0
        %804 = vmatmul.mubr.bf16.gmra.mrb[0].mxu0 %v748
        %v805 = vpop.f32.mrb[0].mxu0
        %v806 = vadd.f32 0.0, %v805
        %v807 = vpop.f32.mrb[0].mxu0
        %v808 = vpop.f32.mrb[0].mxu0
        %v809 = vadd.f32 0.0, %v808
        %v810 = vpop.f32.mrb[0].mxu0
        %811 = vmatprep.mubr.bf16.mxu0 0
        %812 = vmatmul.mubr.bf16.gmra.mrb[0].mxu0 %v749
        %v813 = vpop.f32.mrb[0].mxu0
        %v814 = vadd.f32 0.0, %v813
        %v815 = vpop.f32.mrb[0].mxu0
        %v816 = vpop.f32.mrb[0].mxu0
        %v817 = vadd.f32 0.0, %v816
        %v818 = vpop.f32.mrb[0].mxu0
        %819 = vmatprep.mubr.bf16.mxu0 0
        %820 = vmatmul.mubr.bf16.gmra.mrb[0].mxu0 %v750
        %v821 = vpop.f32.mrb[0].mxu0
        %v822 = vadd.f32 0.0, %v821
        %v823 = vpop.f32.mrb[0].mxu0
        %v824 = vpop.f32.mrb[0].mxu0
        %v825 = vadd.f32 0.0, %v824
        %v826 = vpop.f32.mrb[0].mxu0
        %827 = vmatprep.mubr.bf16.mxu0 0
        %828 = vmatmul.mubr.bf16.gmra.mrb[0].mxu0 %v751
        %v829 = vpop.f32.mrb[0].mxu0
        %v830 = vadd.f32 0.0, %v829
        %v831 = vpop.f32.mrb[0].mxu0
        %v832 = vpop.f32.mrb[0].mxu0
        %v833 = vadd.f32 0.0, %v832
        %v834 = vpop.f32.mrb[0].mxu0
        %835 = vmatprep.mubr.bf16.mxu0 0
        %836 = vmatmul.mubr.bf16.gmra.mrb[0].mxu0 %v752
        %v837 = vpop.f32.mrb[0].mxu0
        %v838 = vadd.f32 0.0, %v837
        %v839 = vpop.f32.mrb[0].mxu0
        %v840 = vpop.f32.mrb[0].mxu0
        %v841 = vadd.f32 0.0, %v840
        %v842 = vpop.f32.mrb[0].mxu0
        %843 = vmatprep.mubr.bf16.mxu0 0
        %844 = vmatmul.mubr.bf16.gmra.mrb[0].mxu0 %v753
        %v845 = vpop.f32.mrb[0].mxu0
        %v846 = vadd.f32 0.0, %v845
        %v847 = vpop.f32.mrb[0].mxu0
        %v848 = vpop.f32.mrb[0].mxu0
        %v849 = vadd.f32 0.0, %v848
        %v850 = vpop.f32.mrb[0].mxu0
        %851 = vmatprep.mubr.bf16.mxu0 0
        %852 = vmatmul.mubr.bf16.gmra.mrb[0].mxu0 %v754
        %v853 = vpop.f32.mrb[0].mxu0
        %v854 = vadd.f32 0.0, %v853
        %v855 = vpop.f32.mrb[0].mxu0
        %v856 = vpop.f32.mrb[0].mxu0
        %v857 = vadd.f32 0.0, %v856
        %v858 = vpop.f32.mrb[0].mxu0
        %859 = vdwg.mxu0
        %860 = vadd.xlane.f32.xlu0 %v653
        %v861 = vpop.xlane.xlu0 %860
        %862 = vadd.xlane.f32.xlu0 %v656
        %v863 = vpop.xlane.xlu0 %862
        %864 = vadd.xlane.f32.xlu0 %v661
        %v865 = vpop.xlane.xlu0 %864
        %866 = vadd.xlane.f32.xlu0 %v664
        %v867 = vpop.xlane.xlu0 %866
        %868 = vadd.xlane.f32.xlu0 %v669
        %v869 = vpop.xlane.xlu0 %868
        %870 = vadd.xlane.f32.xlu0 %v672
        %v871 = vpop.xlane.xlu0 %870
        %872 = vadd.xlane.f32.xlu0 %v677
        %v873 = vpop.xlane.xlu0 %872
        %874 = vadd.xlane.f32.xlu0 %v680
        %v875 = vpop.xlane.xlu0 %874
        %876 = vadd.xlane.f32.xlu0 %v685
        %v877 = vpop.xlane.xlu0 %876
        %878 = vadd.xlane.f32.xlu0 %v688
        %v879 = vpop.xlane.xlu0 %878
        %880 = vadd.xlane.f32.xlu0 %v693
        %v881 = vpop.xlane.xlu0 %880
        %882 = vadd.xlane.f32.xlu0 %v696
        %v883 = vpop.xlane.xlu0 %882
        %884 = vadd.xlane.f32.xlu0 %v701
        %v885 = vpop.xlane.xlu0 %884
        %886 = vadd.xlane.f32.xlu0 %v704
        %v887 = vpop.xlane.xlu0 %886
        %888 = vadd.xlane.f32.xlu0 %v709
        %v889 = vpop.xlane.xlu0 %888
        %890 = vadd.xlane.f32.xlu0 %v712
        %v891 = vpop.xlane.xlu0 %890
        %892 = vadd.xlane.f32.xlu0 %v798
        %v893 = vpop.xlane.xlu0 %892
        %894 = vadd.xlane.f32.xlu0 %v801
        %v895 = vpop.xlane.xlu0 %894
        %896 = vadd.xlane.f32.xlu0 %v806
        %v897 = vpop.xlane.xlu0 %896
        %898 = vadd.xlane.f32.xlu0 %v809
        %v899 = vpop.xlane.xlu0 %898
        %900 = vadd.xlane.f32.xlu0 %v814
        %v901 = vpop.xlane.xlu0 %900
        %902 = vadd.xlane.f32.xlu0 %v817
        %v903 = vpop.xlane.xlu0 %902
        %904 = vadd.xlane.f32.xlu0 %v822
        %v905 = vpop.xlane.xlu0 %904
        %906 = vadd.xlane.f32.xlu0 %v825
        %v907 = vpop.xlane.xlu0 %906
        %908 = vadd.xlane.f32.xlu0 %v830
        %v909 = vpop.xlane.xlu0 %908
        %910 = vadd.xlane.f32.xlu0 %v833
        %v911 = vpop.xlane.xlu0 %910
        %912 = vadd.xlane.f32.xlu0 %v838
        %v913 = vpop.xlane.xlu0 %912
        %914 = vadd.xlane.f32.xlu0 %v841
        %v915 = vpop.xlane.xlu0 %914
        %916 = vadd.xlane.f32.xlu0 %v846
        %v917 = vpop.xlane.xlu0 %916
        %918 = vadd.xlane.f32.xlu0 %v849
        %v919 = vpop.xlane.xlu0 %918
        %920 = vadd.xlane.f32.xlu0 %v854
        %v921 = vpop.xlane.xlu0 %920
        %922 = vadd.xlane.f32.xlu0 %v857
        %v923 = vpop.xlane.xlu0 %922
        %v924 = vrcp.pop 128.0
        %v925 = vmul.f32 %v861, %v924
        %v926 = vmul.f32 %v863, %v924
        %v927 = vmul.f32 %v865, %v924
        %v928 = vmul.f32 %v867, %v924
        %v929 = vmul.f32 %v869, %v924
        %v930 = vmul.f32 %v871, %v924
        %v931 = vmul.f32 %v873, %v924
        %v932 = vmul.f32 %v875, %v924
        %v933 = vmul.f32 %v877, %v924
        %v934 = vmul.f32 %v879, %v924
        %v935 = vmul.f32 %v881, %v924
        %v936 = vmul.f32 %v883, %v924
        %v937 = vmul.f32 %v885, %v924
        %v938 = vmul.f32 %v887, %v924
        %v939 = vmul.f32 %v889, %v924
        %v940 = vmul.f32 %v891, %v924
        %v941 = vmul.f32 %v893, %v924
        %v942 = vmul.f32 %v895, %v924
        %v943 = vmul.f32 %v897, %v924
        %v944 = vmul.f32 %v899, %v924
        %v945 = vmul.f32 %v901, %v924
        %v946 = vmul.f32 %v903, %v924
        %v947 = vmul.f32 %v905, %v924
        %v948 = vmul.f32 %v907, %v924
        %v949 = vmul.f32 %v909, %v924
        %v950 = vmul.f32 %v911, %v924
        %v951 = vmul.f32 %v913, %v924
        %v952 = vmul.f32 %v915, %v924
        %v953 = vmul.f32 %v917, %v924
        %v954 = vmul.f32 %v919, %v924
        %v955 = vmul.f32 %v921, %v924
        %v956 = vmul.f32 %v923, %v924
        %v957 = vsub.f32 %v653, %v925
        %v958 = vsub.f32 %v656, %v926
        %v959 = vsub.f32 %v661, %v927
        %v960 = vsub.f32 %v664, %v928
        %v961 = vsub.f32 %v669, %v929
        %v962 = vsub.f32 %v672, %v930
        %v963 = vsub.f32 %v677, %v931
        %v964 = vsub.f32 %v680, %v932
        %v965 = vsub.f32 %v685, %v933
        %v966 = vsub.f32 %v688, %v934
        %v967 = vsub.f32 %v693, %v935
        %v968 = vsub.f32 %v696, %v936
        %v969 = vsub.f32 %v701, %v937
        %v970 = vsub.f32 %v704, %v938
        %v971 = vsub.f32 %v709, %v939
        %v972 = vsub.f32 %v712, %v940
        %v973 = vsub.f32 %v798, %v941
        %v974 = vsub.f32 %v801, %v942
        %v975 = vsub.f32 %v806, %v943
        %v976 = vsub.f32 %v809, %v944
        %v977 = vsub.f32 %v814, %v945
        %v978 = vsub.f32 %v817, %v946
        %v979 = vsub.f32 %v822, %v947
        %v980 = vsub.f32 %v825, %v948
        %v981 = vsub.f32 %v830, %v949
        %v982 = vsub.f32 %v833, %v950
        %v983 = vsub.f32 %v838, %v951
        %v984 = vsub.f32 %v841, %v952
        %v985 = vsub.f32 %v846, %v953
        %v986 = vsub.f32 %v849, %v954
        %v987 = vsub.f32 %v854, %v955
        %v988 = vsub.f32 %v857, %v956
        %v989 = vmul.f32 %v957, %v957
        %v990 = vmul.f32 %v958, %v958
        %v991 = vmul.f32 %v959, %v959
        %v992 = vmul.f32 %v960, %v960
        %v993 = vmul.f32 %v961, %v961
        %v994 = vmul.f32 %v962, %v962
        %v995 = vmul.f32 %v963, %v963
        %v996 = vmul.f32 %v964, %v964
        %v997 = vmul.f32 %v965, %v965
        %v998 = vmul.f32 %v966, %v966
        %v999 = vmul.f32 %v967, %v967
        %v1000 = vmul.f32 %v968, %v968
        %v1001 = vmul.f32 %v969, %v969
        %v1002 = vmul.f32 %v970, %v970
        %v1003 = vmul.f32 %v971, %v971
        %v1004 = vmul.f32 %v972, %v972
        %v1005 = vmul.f32 %v973, %v973
        %v1006 = vmul.f32 %v974, %v974
        %v1007 = vmul.f32 %v975, %v975
        %v1008 = vmul.f32 %v976, %v976
        %v1009 = vmul.f32 %v977, %v977
        %v1010 = vmul.f32 %v978, %v978
        %v1011 = vmul.f32 %v979, %v979
        %v1012 = vmul.f32 %v980, %v980
        %v1013 = vmul.f32 %v981, %v981
        %v1014 = vmul.f32 %v982, %v982
        %v1015 = vmul.f32 %v983, %v983
        %v1016 = vmul.f32 %v984, %v984
        %v1017 = vmul.f32 %v985, %v985
        %v1018 = vmul.f32 %v986, %v986
        %v1019 = vmul.f32 %v987, %v987
        %v1020 = vmul.f32 %v988, %v988
        %1021 = vadd.xlane.f32.xlu0 %v989
        %v1022 = vpop.xlane.xlu0 %1021
        %1023 = vadd.xlane.f32.xlu0 %v990
        %v1024 = vpop.xlane.xlu0 %1023
        %1025 = vadd.xlane.f32.xlu0 %v991
        %v1026 = vpop.xlane.xlu0 %1025
        %1027 = vadd.xlane.f32.xlu0 %v992
        %v1028 = vpop.xlane.xlu0 %1027
        %1029 = vadd.xlane.f32.xlu0 %v993
        %v1030 = vpop.xlane.xlu0 %1029
        %1031 = vadd.xlane.f32.xlu0 %v994
        %v1032 = vpop.xlane.xlu0 %1031
        %1033 = vadd.xlane.f32.xlu0 %v995
        %v1034 = vpop.xlane.xlu0 %1033
        %1035 = vadd.xlane.f32.xlu0 %v996
        %v1036 = vpop.xlane.xlu0 %1035
        %1037 = vadd.xlane.f32.xlu0 %v997
        %v1038 = vpop.xlane.xlu0 %1037
        %1039 = vadd.xlane.f32.xlu0 %v998
        %v1040 = vpop.xlane.xlu0 %1039
        %1041 = vadd.xlane.f32.xlu0 %v999
        %v1042 = vpop.xlane.xlu0 %1041
        %1043 = vadd.xlane.f32.xlu0 %v1000
        %v1044 = vpop.xlane.xlu0 %1043
        %1045 = vadd.xlane.f32.xlu0 %v1001
        %v1046 = vpop.xlane.xlu0 %1045
        %1047 = vadd.xlane.f32.xlu0 %v1002
        %v1048 = vpop.xlane.xlu0 %1047
        %1049 = vadd.xlane.f32.xlu0 %v1003
        %v1050 = vpop.xlane.xlu0 %1049
        %1051 = vadd.xlane.f32.xlu0 %v1004
        %v1052 = vpop.xlane.xlu0 %1051
        %1053 = vadd.xlane.f32.xlu0 %v1005
        %v1054 = vpop.xlane.xlu0 %1053
        %1055 = vadd.xlane.f32.xlu0 %v1006
        %v1056 = vpop.xlane.xlu0 %1055
        %1057 = vadd.xlane.f32.xlu0 %v1007
        %v1058 = vpop.xlane.xlu0 %1057
        %1059 = vadd.xlane.f32.xlu0 %v1008
        %v1060 = vpop.xlane.xlu0 %1059
        %1061 = vadd.xlane.f32.xlu0 %v1009
        %v1062 = vpop.xlane.xlu0 %1061
        %1063 = vadd.xlane.f32.xlu0 %v1010
        %v1064 = vpop.xlane.xlu0 %1063
        %1065 = vadd.xlane.f32.xlu0 %v1011
        %v1066 = vpop.xlane.xlu0 %1065
        %1067 = vadd.xlane.f32.xlu0 %v1012
        %v1068 = vpop.xlane.xlu0 %1067
        %1069 = vadd.xlane.f32.xlu0 %v1013
        %v1070 = vpop.xlane.xlu0 %1069
        %1071 = vadd.xlane.f32.xlu0 %v1014
        %v1072 = vpop.xlane.xlu0 %1071
        %1073 = vadd.xlane.f32.xlu0 %v1015
        %v1074 = vpop.xlane.xlu0 %1073
        %1075 = vadd.xlane.f32.xlu0 %v1016
        %v1076 = vpop.xlane.xlu0 %1075
        %1077 = vadd.xlane.f32.xlu0 %v1017
        %v1078 = vpop.xlane.xlu0 %1077
        %1079 = vadd.xlane.f32.xlu0 %v1018
        %v1080 = vpop.xlane.xlu0 %1079
        %1081 = vadd.xlane.f32.xlu0 %v1019
        %v1082 = vpop.xlane.xlu0 %1081
        %1083 = vadd.xlane.f32.xlu0 %v1020
        %v1084 = vpop.xlane.xlu0 %1083
        %v1085 = vmul.f32 %v1022, %v924
        %v1086 = vmul.f32 %v1024, %v924
        %v1087 = vmul.f32 %v1026, %v924
        %v1088 = vmul.f32 %v1028, %v924
        %v1089 = vmul.f32 %v1030, %v924
        %v1090 = vmul.f32 %v1032, %v924
        %v1091 = vmul.f32 %v1034, %v924
        %v1092 = vmul.f32 %v1036, %v924
        %v1093 = vmul.f32 %v1038, %v924
        %v1094 = vmul.f32 %v1040, %v924
        %v1095 = vmul.f32 %v1042, %v924
        %v1096 = vmul.f32 %v1044, %v924
        %v1097 = vmul.f32 %v1046, %v924
        %v1098 = vmul.f32 %v1048, %v924
        %v1099 = vmul.f32 %v1050, %v924
        %v1100 = vmul.f32 %v1052, %v924
        %v1101 = vmul.f32 %v1054, %v924
        %v1102 = vmul.f32 %v1056, %v924
        %v1103 = vmul.f32 %v1058, %v924
        %v1104 = vmul.f32 %v1060, %v924
        %v1105 = vmul.f32 %v1062, %v924
        %v1106 = vmul.f32 %v1064, %v924
        %v1107 = vmul.f32 %v1066, %v924
        %v1108 = vmul.f32 %v1068, %v924
        %v1109 = vmul.f32 %v1070, %v924
        %v1110 = vmul.f32 %v1072, %v924
        %v1111 = vmul.f32 %v1074, %v924
        %v1112 = vmul.f32 %v1076, %v924
        %v1113 = vmul.f32 %v1078, %v924
        %v1114 = vmul.f32 %v1080, %v924
        %v1115 = vmul.f32 %v1082, %v924
        %v1116 = vmul.f32 %v1084, %v924
        %v1117 = vadd.f32 %v1085, 1e-05
        %v1118 = vadd.f32 %v1086, 1e-05
        %v1119 = vadd.f32 %v1087, 1e-05
        %v1120 = vadd.f32 %v1088, 1e-05
        %v1121 = vadd.f32 %v1089, 1e-05
        %v1122 = vadd.f32 %v1090, 1e-05
        %v1123 = vadd.f32 %v1091, 1e-05
        %v1124 = vadd.f32 %v1092, 1e-05
        %v1125 = vadd.f32 %v1093, 1e-05
        %v1126 = vadd.f32 %v1094, 1e-05
        %v1127 = vadd.f32 %v1095, 1e-05
        %v1128 = vadd.f32 %v1096, 1e-05
        %v1129 = vadd.f32 %v1097, 1e-05
        %v1130 = vadd.f32 %v1098, 1e-05
        %v1131 = vadd.f32 %v1099, 1e-05
        %v1132 = vadd.f32 %v1100, 1e-05
        %v1133 = vadd.f32 %v1101, 1e-05
        %v1134 = vadd.f32 %v1102, 1e-05
        %v1135 = vadd.f32 %v1103, 1e-05
        %v1136 = vadd.f32 %v1104, 1e-05
        %v1137 = vadd.f32 %v1105, 1e-05
        %v1138 = vadd.f32 %v1106, 1e-05
        %v1139 = vadd.f32 %v1107, 1e-05
        %v1140 = vadd.f32 %v1108, 1e-05
        %v1141 = vadd.f32 %v1109, 1e-05
        %v1142 = vadd.f32 %v1110, 1e-05
        %v1143 = vadd.f32 %v1111, 1e-05
        %v1144 = vadd.f32 %v1112, 1e-05
        %v1145 = vadd.f32 %v1113, 1e-05
        %v1146 = vadd.f32 %v1114, 1e-05
        %v1147 = vadd.f32 %v1115, 1e-05
        %v1148 = vadd.f32 %v1116, 1e-05
        %v1149 = vrsqrt.pop %v1117
        %v1150 = vrsqrt.pop %v1118
        %v1151 = vrsqrt.pop %v1119
        %v1152 = vrsqrt.pop %v1120
        %v1153 = vrsqrt.pop %v1121
        %v1154 = vrsqrt.pop %v1122
        %v1155 = vrsqrt.pop %v1123
        %v1156 = vrsqrt.pop %v1124
        %v1157 = vrsqrt.pop %v1125
        %v1158 = vrsqrt.pop %v1126
        %v1159 = vrsqrt.pop %v1127
        %v1160 = vrsqrt.pop %v1128
        %v1161 = vrsqrt.pop %v1129
        %v1162 = vrsqrt.pop %v1130
        %v1163 = vrsqrt.pop %v1131
        %v1164 = vrsqrt.pop %v1132
        %v1165 = vrsqrt.pop %v1133
        %v1166 = vrsqrt.pop %v1134
        %v1167 = vrsqrt.pop %v1135
        %v1168 = vrsqrt.pop %v1136
        %v1169 = vrsqrt.pop %v1137
        %v1170 = vrsqrt.pop %v1138
        %v1171 = vrsqrt.pop %v1139
        %v1172 = vrsqrt.pop %v1140
        %v1173 = vrsqrt.pop %v1141
        %v1174 = vrsqrt.pop %v1142
        %v1175 = vrsqrt.pop %v1143
        %v1176 = vrsqrt.pop %v1144
        %v1177 = vrsqrt.pop %v1145
        %v1178 = vrsqrt.pop %v1146
        %v1179 = vrsqrt.pop %v1147
        %v1180 = vrsqrt.pop %v1148
        %v1181 = vmul.f32 %v957, %v1149
        %v1182 = vmul.f32 %v958, %v1150
        %v1183 = vmul.f32 %v959, %v1151
        %v1184 = vmul.f32 %v960, %v1152
        %v1185 = vmul.f32 %v961, %v1153
        %v1186 = vmul.f32 %v962, %v1154
        %v1187 = vmul.f32 %v963, %v1155
        %v1188 = vmul.f32 %v964, %v1156
        %v1189 = vmul.f32 %v965, %v1157
        %v1190 = vmul.f32 %v966, %v1158
        %v1191 = vmul.f32 %v967, %v1159
        %v1192 = vmul.f32 %v968, %v1160
        %v1193 = vmul.f32 %v969, %v1161
        %v1194 = vmul.f32 %v970, %v1162
        %v1195 = vmul.f32 %v971, %v1163
        %v1196 = vmul.f32 %v972, %v1164
        %v1197 = vmul.f32 %v973, %v1165
        %v1198 = vmul.f32 %v974, %v1166
        %v1199 = vmul.f32 %v975, %v1167
        %v1200 = vmul.f32 %v976, %v1168
        %v1201 = vmul.f32 %v977, %v1169
        %v1202 = vmul.f32 %v978, %v1170
        %v1203 = vmul.f32 %v979, %v1171
        %v1204 = vmul.f32 %v980, %v1172
        %v1205 = vmul.f32 %v981, %v1173
        %v1206 = vmul.f32 %v982, %v1174
        %v1207 = vmul.f32 %v983, %v1175
        %v1208 = vmul.f32 %v984, %v1176
        %v1209 = vmul.f32 %v985, %v1177
        %v1210 = vmul.f32 %v986, %v1178
        %v1211 = vmul.f32 %v987, %v1179
        %v1212 = vmul.f32 %v988, %v1180
        %v1213 = vmax.f32 %v1181, 0.0
        %v1214 = vmax.f32 %v1182, 0.0
        %v1215 = vmax.f32 %v1183, 0.0
        %v1216 = vmax.f32 %v1184, 0.0
        %v1217 = vmax.f32 %v1185, 0.0
        %v1218 = vmax.f32 %v1186, 0.0
        %v1219 = vmax.f32 %v1187, 0.0
        %v1220 = vmax.f32 %v1188, 0.0
        %v1221 = vmax.f32 %v1189, 0.0
        %v1222 = vmax.f32 %v1190, 0.0
        %v1223 = vmax.f32 %v1191, 0.0
        %v1224 = vmax.f32 %v1192, 0.0
        %v1225 = vmax.f32 %v1193, 0.0
        %v1226 = vmax.f32 %v1194, 0.0
        %v1227 = vmax.f32 %v1195, 0.0
        %v1228 = vmax.f32 %v1196, 0.0
        %v1229 = vmax.f32 %v1197, 0.0
        %v1230 = vmax.f32 %v1198, 0.0
        %v1231 = vmax.f32 %v1199, 0.0
        %v1232 = vmax.f32 %v1200, 0.0
        %v1233 = vmax.f32 %v1201, 0.0
        %v1234 = vmax.f32 %v1202, 0.0
        %v1235 = vmax.f32 %v1203, 0.0
        %v1236 = vmax.f32 %v1204, 0.0
        %v1237 = vmax.f32 %v1205, 0.0
        %v1238 = vmax.f32 %v1206, 0.0
        %v1239 = vmax.f32 %v1207, 0.0
        %v1240 = vmax.f32 %v1208, 0.0
        %v1241 = vmax.f32 %v1209, 0.0
        %v1242 = vmax.f32 %v1210, 0.0
        %v1243 = vmax.f32 %v1211, 0.0
        %v1244 = vmax.f32 %v1212, 0.0
        %v1245 = vpack.c.bf16 %v1214, %v1213
        %v1246 = vpack.c.bf16 %v1216, %v1215
        %v1247 = vpack.c.bf16 %v1218, %v1217
        %v1248 = vpack.c.bf16 %v1220, %v1219
        %v1249 = vpack.c.bf16 %v1222, %v1221
        %v1250 = vpack.c.bf16 %v1224, %v1223
        %v1251 = vpack.c.bf16 %v1226, %v1225
        %v1252 = vpack.c.bf16 %v1228, %v1227
        %v1253 = vpack.c.bf16 %v1230, %v1229
        %v1254 = vpack.c.bf16 %v1232, %v1231
        %v1255 = vpack.c.bf16 %v1234, %v1233
        %v1256 = vpack.c.bf16 %v1236, %v1235
        %v1257 = vpack.c.bf16 %v1238, %v1237
        %v1258 = vpack.c.bf16 %v1240, %v1239
        %v1259 = vpack.c.bf16 %v1242, %v1241
        %v1260 = vpack.c.bf16 %v1244, %v1243
        %s1261 = scalar_lea.vmem [#allocation7], 64
        %v1262 = vld [vmem:[%s1261] sm:$0xf]
        %v1263 = vld [vmem:[%s1261 + $0x4] sm:$0xf]
        %v1264 = vld [vmem:[%s1261 + $0x8] sm:$0xf]
        %v1265 = vld [vmem:[%s1261 + $0xc] sm:$0xf]
        %v1266 = vld [vmem:[%s1261 + $0x10] sm:$0xf]
        %v1267 = vld [vmem:[%s1261 + $0x14] sm:$0xf]
        %v1268 = vld [vmem:[%s1261 + $0x18] sm:$0xf]
        %v1269 = vld [vmem:[%s1261 + $0x1c] sm:$0xf]
        %v1270 = vld [vmem:[%s1261 + $0x20] sm:$0xf]
        %v1271 = vld [vmem:[%s1261 + $0x24] sm:$0xf]
        %v1272 = vld [vmem:[%s1261 + $0x28] sm:$0xf]
        %v1273 = vld [vmem:[%s1261 + $0x2c] sm:$0xf]
        %v1274 = vld [vmem:[%s1261 + $0x30] sm:$0xf]
        %v1275 = vld [vmem:[%s1261 + $0x34] sm:$0xf]
        %v1276 = vld [vmem:[%s1261 + $0x38] sm:$0xf]
        %v1277 = vld [vmem:[%s1261 + $0x3c] sm:$0xf]
        %v1294 = vunpack.c.l.b16 %v1262
        %v1295 = vunpack.c.l.b16 %v1263
        %v1296 = vunpack.c.l.b16 %v1264
        %v1297 = vunpack.c.l.b16 %v1265
        %v1298 = vunpack.c.l.b16 %v1266
        %v1299 = vunpack.c.l.b16 %v1267
        %v1300 = vunpack.c.l.b16 %v1268
        %v1301 = vunpack.c.l.b16 %v1269
        %v1302 = vunpack.c.l.b16 %v1270
        %v1303 = vunpack.c.l.b16 %v1271
        %v1304 = vunpack.c.l.b16 %v1272
        %v1305 = vunpack.c.l.b16 %v1273
        %v1306 = vunpack.c.l.b16 %v1274
        %v1307 = vunpack.c.l.b16 %v1275
        %v1308 = vunpack.c.l.b16 %v1276
        %v1309 = vunpack.c.l.b16 %v1277
        %v1310 = vpack.c.b16 %v1295, %v1294
        %v1311 = vpack.c.b16 %v1297, %v1296
        %v1312 = vpack.c.b16 %v1299, %v1298
        %v1313 = vpack.c.b16 %v1301, %v1300
        %v1314 = vpack.c.b16 %v1303, %v1302
        %v1315 = vpack.c.b16 %v1305, %v1304
        %v1316 = vpack.c.b16 %v1307, %v1306
        %v1317 = vpack.c.b16 %v1309, %v1308
        %1326 = vmatprep.subr.bf16.mxu0 0
        %1327 = vmatpush1.bf16.msra.mxu0 %v1310
        %1328 = vmatprep.subr.bf16.mxu0 0
        %1329 = vmatpush1.bf16.msra.mxu0 %v1311
        %1330 = vmatprep.subr.bf16.mxu0 0
        %1331 = vmatpush1.bf16.msra.mxu0 %v1312
        %1332 = vmatprep.subr.bf16.mxu0 0
        %1333 = vmatpush1.bf16.msra.mxu0 %v1313
        %1334 = vmatprep.subr.bf16.mxu0 0
        %1335 = vmatpush1.bf16.msra.mxu0 %v1314
        %1336 = vmatprep.subr.bf16.mxu0 0
        %1337 = vmatpush1.bf16.msra.mxu0 %v1315
        %1338 = vmatprep.subr.bf16.mxu0 0
        %1339 = vmatpush1.bf16.msra.mxu0 %v1316
        %1340 = vmatprep.subr.bf16.mxu0 0
        %1341 = vmatpush1.bf16.msra.mxu0 %v1317
        %1342 = vmatprep.subr.bf16.mxu0 0
        %1343 = vmatpush1.bf16.msra.mxu0 0
        %1344 = vmatprep.subr.bf16.mxu0 0
        %1345 = vmatpush1.bf16.msra.mxu0 0
        %1346 = vmatprep.subr.bf16.mxu0 0
        %1347 = vmatpush1.bf16.msra.mxu0 0
        %1348 = vmatprep.subr.bf16.mxu0 0
        %1349 = vmatpush1.bf16.msra.mxu0 0
        %1350 = vmatprep.subr.bf16.mxu0 0
        %1351 = vmatpush1.bf16.msra.mxu0 0
        %1352 = vmatprep.subr.bf16.mxu0 0
        %1353 = vmatpush1.bf16.msra.mxu0 0
        %1354 = vmatprep.subr.bf16.mxu0 0
        %1355 = vmatpush1.bf16.msra.mxu0 0
        %1356 = vmatprep.subr.bf16.mxu0 0
        %1357 = vmatpush1.bf16.msra.mxu0 0
        %1358 = vmatprep.mubr.bf16.mxu0 0
        %1359 = vmatmul.mubr.bf16.gmra.mrb[0].mxu0 %v1245
        %v1360 = vpop.f32.mrb[0].mxu0
        %v1361 = vadd.f32 0.0, %v1360
        %v1362 = vpop.f32.mrb[0].mxu0
        %v1363 = vpop.f32.mrb[0].mxu0
        %v1364 = vadd.f32 0.0, %v1363
        %v1365 = vpop.f32.mrb[0].mxu0
        %1366 = vmatprep.mubr.bf16.mxu0 0
        %1367 = vmatmul.mubr.bf16.gmra.mrb[0].mxu0 %v1246
        %v1368 = vpop.f32.mrb[0].mxu0
        %v1369 = vadd.f32 0.0, %v1368
        %v1370 = vpop.f32.mrb[0].mxu0
        %v1371 = vpop.f32.mrb[0].mxu0
        %v1372 = vadd.f32 0.0, %v1371
        %v1373 = vpop.f32.mrb[0].mxu0
        %1374 = vmatprep.mubr.bf16.mxu0 0
        %1375 = vmatmul.mubr.bf16.gmra.mrb[0].mxu0 %v1247
        %v1376 = vpop.f32.mrb[0].mxu0
        %v1377 = vadd.f32 0.0, %v1376
        %v1378 = vpop.f32.mrb[0].mxu0
        %v1379 = vpop.f32.mrb[0].mxu0
        %v1380 = vadd.f32 0.0, %v1379
        %v1381 = vpop.f32.mrb[0].mxu0
        %1382 = vmatprep.mubr.bf16.mxu0 0
        %1383 = vmatmul.mubr.bf16.gmra.mrb[0].mxu0 %v1248
        %v1384 = vpop.f32.mrb[0].mxu0
        %v1385 = vadd.f32 0.0, %v1384
        %v1386 = vpop.f32.mrb[0].mxu0
        %v1387 = vpop.f32.mrb[0].mxu0
        %v1388 = vadd.f32 0.0, %v1387
        %v1389 = vpop.f32.mrb[0].mxu0
        %1390 = vmatprep.mubr.bf16.mxu0 0
        %1391 = vmatmul.mubr.bf16.gmra.mrb[0].mxu0 %v1249
        %v1392 = vpop.f32.mrb[0].mxu0
        %v1393 = vadd.f32 0.0, %v1392
        %v1394 = vpop.f32.mrb[0].mxu0
        %v1395 = vpop.f32.mrb[0].mxu0
        %v1396 = vadd.f32 0.0, %v1395
        %v1397 = vpop.f32.mrb[0].mxu0
        %1398 = vmatprep.mubr.bf16.mxu0 0
        %1399 = vmatmul.mubr.bf16.gmra.mrb[0].mxu0 %v1250
        %v1400 = vpop.f32.mrb[0].mxu0
        %v1401 = vadd.f32 0.0, %v1400
        %v1402 = vpop.f32.mrb[0].mxu0
        %v1403 = vpop.f32.mrb[0].mxu0
        %v1404 = vadd.f32 0.0, %v1403
        %v1405 = vpop.f32.mrb[0].mxu0
        %1406 = vmatprep.mubr.bf16.mxu0 0
        %1407 = vmatmul.mubr.bf16.gmra.mrb[0].mxu0 %v1251
        %v1408 = vpop.f32.mrb[0].mxu0
        %v1409 = vadd.f32 0.0, %v1408
        %v1410 = vpop.f32.mrb[0].mxu0
        %v1411 = vpop.f32.mrb[0].mxu0
        %v1412 = vadd.f32 0.0, %v1411
        %v1413 = vpop.f32.mrb[0].mxu0
        %1414 = vmatprep.mubr.bf16.mxu0 0
        %1415 = vmatmul.mubr.bf16.gmra.mrb[0].mxu0 %v1252
        %v1416 = vpop.f32.mrb[0].mxu0
        %v1417 = vadd.f32 0.0, %v1416
        %v1418 = vpop.f32.mrb[0].mxu0
        %v1419 = vpop.f32.mrb[0].mxu0
        %v1420 = vadd.f32 0.0, %v1419
        %v1421 = vpop.f32.mrb[0].mxu0
        %1422 = vmatprep.mubr.bf16.mxu0 0
        %1423 = vmatmul.mubr.bf16.gmra.mrb[0].mxu0 %v1253
        %v1424 = vpop.f32.mrb[0].mxu0
        %v1425 = vadd.f32 0.0, %v1424
        %v1426 = vpop.f32.mrb[0].mxu0
        %v1427 = vpop.f32.mrb[0].mxu0
        %v1428 = vadd.f32 0.0, %v1427
        %v1429 = vpop.f32.mrb[0].mxu0
        %1430 = vmatprep.mubr.bf16.mxu0 0
        %1431 = vmatmul.mubr.bf16.gmra.mrb[0].mxu0 %v1254
        %v1432 = vpop.f32.mrb[0].mxu0
        %v1433 = vadd.f32 0.0, %v1432
        %v1434 = vpop.f32.mrb[0].mxu0
        %v1435 = vpop.f32.mrb[0].mxu0
        %v1436 = vadd.f32 0.0, %v1435
        %v1437 = vpop.f32.mrb[0].mxu0
        %1438 = vmatprep.mubr.bf16.mxu0 0
        %1439 = vmatmul.mubr.bf16.gmra.mrb[0].mxu0 %v1255
        %v1440 = vpop.f32.mrb[0].mxu0
        %v1441 = vadd.f32 0.0, %v1440
        %v1442 = vpop.f32.mrb[0].mxu0
        %v1443 = vpop.f32.mrb[0].mxu0
        %v1444 = vadd.f32 0.0, %v1443
        %v1445 = vpop.f32.mrb[0].mxu0
        %1446 = vmatprep.mubr.bf16.mxu0 0
        %1447 = vmatmul.mubr.bf16.gmra.mrb[0].mxu0 %v1256
        %v1448 = vpop.f32.mrb[0].mxu0
        %v1449 = vadd.f32 0.0, %v1448
        %v1450 = vpop.f32.mrb[0].mxu0
        %v1451 = vpop.f32.mrb[0].mxu0
        %v1452 = vadd.f32 0.0, %v1451
        %v1453 = vpop.f32.mrb[0].mxu0
        %1454 = vmatprep.mubr.bf16.mxu0 0
        %1455 = vmatmul.mubr.bf16.gmra.mrb[0].mxu0 %v1257
        %v1456 = vpop.f32.mrb[0].mxu0
        %v1457 = vadd.f32 0.0, %v1456
        %v1458 = vpop.f32.mrb[0].mxu0
        %v1459 = vpop.f32.mrb[0].mxu0
        %v1460 = vadd.f32 0.0, %v1459
        %v1461 = vpop.f32.mrb[0].mxu0
        %1462 = vmatprep.mubr.bf16.mxu0 0
        %1463 = vmatmul.mubr.bf16.gmra.mrb[0].mxu0 %v1258
        %v1464 = vpop.f32.mrb[0].mxu0
        %v1465 = vadd.f32 0.0, %v1464
        %v1466 = vpop.f32.mrb[0].mxu0
        %v1467 = vpop.f32.mrb[0].mxu0
        %v1468 = vadd.f32 0.0, %v1467
        %v1469 = vpop.f32.mrb[0].mxu0
        %1470 = vmatprep.mubr.bf16.mxu0 0
        %1471 = vmatmul.mubr.bf16.gmra.mrb[0].mxu0 %v1259
        %v1472 = vpop.f32.mrb[0].mxu0
        %v1473 = vadd.f32 0.0, %v1472
        %v1474 = vpop.f32.mrb[0].mxu0
        %v1475 = vpop.f32.mrb[0].mxu0
        %v1476 = vadd.f32 0.0, %v1475
        %v1477 = vpop.f32.mrb[0].mxu0
        %1478 = vmatprep.mubr.bf16.mxu0 0
        %1479 = vmatmul.mubr.bf16.gmra.mrb[0].mxu0 %v1260
        %v1480 = vpop.f32.mrb[0].mxu0
        %v1481 = vadd.f32 0.0, %v1480
        %v1482 = vpop.f32.mrb[0].mxu0
        %v1483 = vpop.f32.mrb[0].mxu0
        %v1484 = vadd.f32 0.0, %v1483
        %v1485 = vpop.f32.mrb[0].mxu0
        %1486 = vdwg.mxu0
        %v1487 = vpack.c.bf16 %v1364, %v1361
        %v1488 = vpack.c.bf16 %v1372, %v1369
        %v1489 = vpack.c.bf16 %v1380, %v1377
        %v1490 = vpack.c.bf16 %v1388, %v1385
        %v1491 = vpack.c.bf16 %v1396, %v1393
        %v1492 = vpack.c.bf16 %v1404, %v1401
        %v1493 = vpack.c.bf16 %v1412, %v1409
        %v1494 = vpack.c.bf16 %v1420, %v1417
        %v1495 = vpack.c.bf16 %v1428, %v1425
        %v1496 = vpack.c.bf16 %v1436, %v1433
        %v1497 = vpack.c.bf16 %v1444, %v1441
        %v1498 = vpack.c.bf16 %v1452, %v1449
        %v1499 = vpack.c.bf16 %v1460, %v1457
        %v1500 = vpack.c.bf16 %v1468, %v1465
        %v1501 = vpack.c.bf16 %v1476, %v1473
        %v1502 = vpack.c.bf16 %v1484, %v1481
        %1503 = vmatprep.subr.bf16.mxu0 0
        %1504 = vmatpush1.bf16.msra.mxu0 %v1487
        %1505 = vmatprep.subr.bf16.mxu0 0
        %1506 = vmatpush1.bf16.msra.mxu0 %v1488
        %1507 = vmatprep.subr.bf16.mxu0 0
        %1508 = vmatpush1.bf16.msra.mxu0 %v1489
        %1509 = vmatprep.subr.bf16.mxu0 0
        %1510 = vmatpush1.bf16.msra.mxu0 %v1490
        %1511 = vmatprep.subr.bf16.mxu0 0
        %1512 = vmatpush1.bf16.msra.mxu0 %v1491
        %1513 = vmatprep.subr.bf16.mxu0 0
        %1514 = vmatpush1.bf16.msra.mxu0 %v1492
        %1515 = vmatprep.subr.bf16.mxu0 0
        %1516 = vmatpush1.bf16.msra.mxu0 %v1493
        %1517 = vmatprep.subr.bf16.mxu0 0
        %1518 = vmatpush1.bf16.msra.mxu0 %v1494
        %1519 = vmatprep.subr.bf16.mxu0 0
        %1520 = vmatpush1.bf16.msra.mxu0 0
        %1521 = vmatprep.subr.bf16.mxu0 0
        %1522 = vmatpush1.bf16.msra.mxu0 0
        %1523 = vmatprep.subr.bf16.mxu0 0
        %1524 = vmatpush1.bf16.msra.mxu0 0
        %1525 = vmatprep.subr.bf16.mxu0 0
        %1526 = vmatpush1.bf16.msra.mxu0 0
        %1527 = vmatprep.subr.bf16.mxu0 0
        %1528 = vmatpush1.bf16.msra.mxu0 0
        %1529 = vmatprep.subr.bf16.mxu0 0
        %1530 = vmatpush1.bf16.msra.mxu0 0
        %1531 = vmatprep.subr.bf16.mxu0 0
        %1532 = vmatpush1.bf16.msra.mxu0 0
        %1533 = vmatprep.subr.bf16.mxu0 0
        %1534 = vmatpush1.bf16.msra.mxu0 0
        %1535 = vmatprep.mubr.bf16.mxu0 0
        %1536 = vmatmul.mubr.bf16.gmra.mrb[0].mxu0 %v602
        %v1537 = vpop.f32.mrb[0].mxu0
        %v1538 = vadd.f32 0.0, %v1537
        %v1539 = vpop.f32.mrb[0].mxu0
        %v1540 = vpop.f32.mrb[0].mxu0
        %v1541 = vadd.f32 0.0, %v1540
        %v1542 = vpop.f32.mrb[0].mxu0
        %1543 = vmatprep.mubr.bf16.mxu0 0
        %1544 = vmatmul.mubr.bf16.gmra.mrb[0].mxu0 %v603
        %v1545 = vpop.f32.mrb[0].mxu0
        %v1546 = vadd.f32 0.0, %v1545
        %v1547 = vpop.f32.mrb[0].mxu0
        %v1548 = vpop.f32.mrb[0].mxu0
        %v1549 = vadd.f32 0.0, %v1548
        %v1550 = vpop.f32.mrb[0].mxu0
        %1551 = vmatprep.mubr.bf16.mxu0 0
        %1552 = vmatmul.mubr.bf16.gmra.mrb[0].mxu0 %v604
        %v1553 = vpop.f32.mrb[0].mxu0
        %v1554 = vadd.f32 0.0, %v1553
        %v1555 = vpop.f32.mrb[0].mxu0
        %v1556 = vpop.f32.mrb[0].mxu0
        %v1557 = vadd.f32 0.0, %v1556
        %v1558 = vpop.f32.mrb[0].mxu0
        %1559 = vmatprep.mubr.bf16.mxu0 0
        %1560 = vmatmul.mubr.bf16.gmra.mrb[0].mxu0 %v605
        %v1561 = vpop.f32.mrb[0].mxu0
        %v1562 = vadd.f32 0.0, %v1561
        %v1563 = vpop.f32.mrb[0].mxu0
        %v1564 = vpop.f32.mrb[0].mxu0
        %v1565 = vadd.f32 0.0, %v1564
        %v1566 = vpop.f32.mrb[0].mxu0
        %1567 = vmatprep.mubr.bf16.mxu0 0
        %1568 = vmatmul.mubr.bf16.gmra.mrb[0].mxu0 %v606
        %v1569 = vpop.f32.mrb[0].mxu0
        %v1570 = vadd.f32 0.0, %v1569
        %v1571 = vpop.f32.mrb[0].mxu0
        %v1572 = vpop.f32.mrb[0].mxu0
        %v1573 = vadd.f32 0.0, %v1572
        %v1574 = vpop.f32.mrb[0].mxu0
        %1575 = vmatprep.mubr.bf16.mxu0 0
        %1576 = vmatmul.mubr.bf16.gmra.mrb[0].mxu0 %v607
        %v1577 = vpop.f32.mrb[0].mxu0
        %v1578 = vadd.f32 0.0, %v1577
        %v1579 = vpop.f32.mrb[0].mxu0
        %v1580 = vpop.f32.mrb[0].mxu0
        %v1581 = vadd.f32 0.0, %v1580
        %v1582 = vpop.f32.mrb[0].mxu0
        %1583 = vmatprep.mubr.bf16.mxu0 0
        %1584 = vmatmul.mubr.bf16.gmra.mrb[0].mxu0 %v608
        %v1585 = vpop.f32.mrb[0].mxu0
        %v1586 = vadd.f32 0.0, %v1585
        %v1587 = vpop.f32.mrb[0].mxu0
        %v1588 = vpop.f32.mrb[0].mxu0
        %v1589 = vadd.f32 0.0, %v1588
        %v1590 = vpop.f32.mrb[0].mxu0
        %1591 = vmatprep.mubr.bf16.mxu0 0
        %1592 = vmatmul.mubr.bf16.gmra.mrb[0].mxu0 %v609
        %v1593 = vpop.f32.mrb[0].mxu0
        %v1594 = vadd.f32 0.0, %v1593
        %v1595 = vpop.f32.mrb[0].mxu0
        %v1596 = vpop.f32.mrb[0].mxu0
        %v1597 = vadd.f32 0.0, %v1596
        %v1598 = vpop.f32.mrb[0].mxu0
        %1599 = vdwg.mxu0
        %1600 = vmatprep.subr.bf16.mxu0 0
        %1601 = vmatpush1.bf16.msra.mxu0 %v1495
        %1602 = vmatprep.subr.bf16.mxu0 0
        %1603 = vmatpush1.bf16.msra.mxu0 %v1496
        %1604 = vmatprep.subr.bf16.mxu0 0
        %1605 = vmatpush1.bf16.msra.mxu0 %v1497
        %1606 = vmatprep.subr.bf16.mxu0 0
        %1607 = vmatpush1.bf16.msra.mxu0 %v1498
        %1608 = vmatprep.subr.bf16.mxu0 0
        %1609 = vmatpush1.bf16.msra.mxu0 %v1499
        %1610 = vmatprep.subr.bf16.mxu0 0
        %1611 = vmatpush1.bf16.msra.mxu0 %v1500
        %1612 = vmatprep.subr.bf16.mxu0 0
        %1613 = vmatpush1.bf16.msra.mxu0 %v1501
        %1614 = vmatprep.subr.bf16.mxu0 0
        %1615 = vmatpush1.bf16.msra.mxu0 %v1502
        %1616 = vmatprep.subr.bf16.mxu0 0
        %1617 = vmatpush1.bf16.msra.mxu0 0
        %1618 = vmatprep.subr.bf16.mxu0 0
        %1619 = vmatpush1.bf16.msra.mxu0 0
        %1620 = vmatprep.subr.bf16.mxu0 0
        %1621 = vmatpush1.bf16.msra.mxu0 0
        %1622 = vmatprep.subr.bf16.mxu0 0
        %1623 = vmatpush1.bf16.msra.mxu0 0
        %1624 = vmatprep.subr.bf16.mxu0 0
        %1625 = vmatpush1.bf16.msra.mxu0 0
        %1626 = vmatprep.subr.bf16.mxu0 0
        %1627 = vmatpush1.bf16.msra.mxu0 0
        %1628 = vmatprep.subr.bf16.mxu0 0
        %1629 = vmatpush1.bf16.msra.mxu0 0
        %1630 = vmatprep.subr.bf16.mxu0 0
        %1631 = vmatpush1.bf16.msra.mxu0 0
        %1632 = vmatprep.mubr.bf16.mxu0 0
        %1633 = vmatmul.mubr.bf16.gmra.mrb[0].mxu0 %v747
        %v1634 = vpop.f32.mrb[0].mxu0
        %v1635 = vadd.f32 0.0, %v1634
        %v1636 = vpop.f32.mrb[0].mxu0
        %v1637 = vpop.f32.mrb[0].mxu0
        %v1638 = vadd.f32 0.0, %v1637
        %v1639 = vpop.f32.mrb[0].mxu0
        %1640 = vmatprep.mubr.bf16.mxu0 0
        %1641 = vmatmul.mubr.bf16.gmra.mrb[0].mxu0 %v748
        %v1642 = vpop.f32.mrb[0].mxu0
        %v1643 = vadd.f32 0.0, %v1642
        %v1644 = vpop.f32.mrb[0].mxu0
        %v1645 = vpop.f32.mrb[0].mxu0
        %v1646 = vadd.f32 0.0, %v1645
        %v1647 = vpop.f32.mrb[0].mxu0
        %1648 = vmatprep.mubr.bf16.mxu0 0
        %1649 = vmatmul.mubr.bf16.gmra.mrb[0].mxu0 %v749
        %v1650 = vpop.f32.mrb[0].mxu0
        %v1651 = vadd.f32 0.0, %v1650
        %v1652 = vpop.f32.mrb[0].mxu0
        %v1653 = vpop.f32.mrb[0].mxu0
        %v1654 = vadd.f32 0.0, %v1653
        %v1655 = vpop.f32.mrb[0].mxu0
        %1656 = vmatprep.mubr.bf16.mxu0 0
        %1657 = vmatmul.mubr.bf16.gmra.mrb[0].mxu0 %v750
        %v1658 = vpop.f32.mrb[0].mxu0
        %v1659 = vadd.f32 0.0, %v1658
        %v1660 = vpop.f32.mrb[0].mxu0
        %v1661 = vpop.f32.mrb[0].mxu0
        %v1662 = vadd.f32 0.0, %v1661
        %v1663 = vpop.f32.mrb[0].mxu0
        %1664 = vmatprep.mubr.bf16.mxu0 0
        %1665 = vmatmul.mubr.bf16.gmra.mrb[0].mxu0 %v751
        %v1666 = vpop.f32.mrb[0].mxu0
        %v1667 = vadd.f32 0.0, %v1666
        %v1668 = vpop.f32.mrb[0].mxu0
        %v1669 = vpop.f32.mrb[0].mxu0
        %v1670 = vadd.f32 0.0, %v1669
        %v1671 = vpop.f32.mrb[0].mxu0
        %1672 = vmatprep.mubr.bf16.mxu0 0
        %1673 = vmatmul.mubr.bf16.gmra.mrb[0].mxu0 %v752
        %v1674 = vpop.f32.mrb[0].mxu0
        %v1675 = vadd.f32 0.0, %v1674
        %v1676 = vpop.f32.mrb[0].mxu0
        %v1677 = vpop.f32.mrb[0].mxu0
        %v1678 = vadd.f32 0.0, %v1677
        %v1679 = vpop.f32.mrb[0].mxu0
        %1680 = vmatprep.mubr.bf16.mxu0 0
        %1681 = vmatmul.mubr.bf16.gmra.mrb[0].mxu0 %v753
        %v1682 = vpop.f32.mrb[0].mxu0
        %v1683 = vadd.f32 0.0, %v1682
        %v1684 = vpop.f32.mrb[0].mxu0
        %v1685 = vpop.f32.mrb[0].mxu0
        %v1686 = vadd.f32 0.0, %v1685
        %v1687 = vpop.f32.mrb[0].mxu0
        %1688 = vmatprep.mubr.bf16.mxu0 0
        %1689 = vmatmul.mubr.bf16.gmra.mrb[0].mxu0 %v754
        %v1690 = vpop.f32.mrb[0].mxu0
        %v1691 = vadd.f32 0.0, %v1690
        %v1692 = vpop.f32.mrb[0].mxu0
        %v1693 = vpop.f32.mrb[0].mxu0
        %v1694 = vadd.f32 0.0, %v1693
        %v1695 = vpop.f32.mrb[0].mxu0
        %1696 = vdwg.mxu0
        %1697 = vadd.xlane.f32.xlu0 %v1538
        %v1698 = vpop.xlane.xlu0 %1697
        %1699 = vadd.xlane.f32.xlu0 %v1541
        %v1700 = vpop.xlane.xlu0 %1699
        %1701 = vadd.xlane.f32.xlu0 %v1546
        %v1702 = vpop.xlane.xlu0 %1701
        %1703 = vadd.xlane.f32.xlu0 %v1549
        %v1704 = vpop.xlane.xlu0 %1703
        %1705 = vadd.xlane.f32.xlu0 %v1554
        %v1706 = vpop.xlane.xlu0 %1705
        %1707 = vadd.xlane.f32.xlu0 %v1557
        %v1708 = vpop.xlane.xlu0 %1707
        %1709 = vadd.xlane.f32.xlu0 %v1562
        %v1710 = vpop.xlane.xlu0 %1709
        %1711 = vadd.xlane.f32.xlu0 %v1565
        %v1712 = vpop.xlane.xlu0 %1711
        %1713 = vadd.xlane.f32.xlu0 %v1570
        %v1714 = vpop.xlane.xlu0 %1713
        %1715 = vadd.xlane.f32.xlu0 %v1573
        %v1716 = vpop.xlane.xlu0 %1715
        %1717 = vadd.xlane.f32.xlu0 %v1578
        %v1718 = vpop.xlane.xlu0 %1717
        %1719 = vadd.xlane.f32.xlu0 %v1581
        %v1720 = vpop.xlane.xlu0 %1719
        %1721 = vadd.xlane.f32.xlu0 %v1586
        %v1722 = vpop.xlane.xlu0 %1721
        %1723 = vadd.xlane.f32.xlu0 %v1589
        %v1724 = vpop.xlane.xlu0 %1723
        %1725 = vadd.xlane.f32.xlu0 %v1594
        %v1726 = vpop.xlane.xlu0 %1725
        %1727 = vadd.xlane.f32.xlu0 %v1597
        %v1728 = vpop.xlane.xlu0 %1727
        %1729 = vadd.xlane.f32.xlu0 %v1635
        %v1730 = vpop.xlane.xlu0 %1729
        %1731 = vadd.xlane.f32.xlu0 %v1638
        %v1732 = vpop.xlane.xlu0 %1731
        %1733 = vadd.xlane.f32.xlu0 %v1643
        %v1734 = vpop.xlane.xlu0 %1733
        %1735 = vadd.xlane.f32.xlu0 %v1646
        %v1736 = vpop.xlane.xlu0 %1735
        %1737 = vadd.xlane.f32.xlu0 %v1651
        %v1738 = vpop.xlane.xlu0 %1737
        %1739 = vadd.xlane.f32.xlu0 %v1654
        %v1740 = vpop.xlane.xlu0 %1739
        %1741 = vadd.xlane.f32.xlu0 %v1659
        %v1742 = vpop.xlane.xlu0 %1741
        %1743 = vadd.xlane.f32.xlu0 %v1662
        %v1744 = vpop.xlane.xlu0 %1743
        %1745 = vadd.xlane.f32.xlu0 %v1667
        %v1746 = vpop.xlane.xlu0 %1745
        %1747 = vadd.xlane.f32.xlu0 %v1670
        %v1748 = vpop.xlane.xlu0 %1747
        %1749 = vadd.xlane.f32.xlu0 %v1675
        %v1750 = vpop.xlane.xlu0 %1749
        %1751 = vadd.xlane.f32.xlu0 %v1678
        %v1752 = vpop.xlane.xlu0 %1751
        %1753 = vadd.xlane.f32.xlu0 %v1683
        %v1754 = vpop.xlane.xlu0 %1753
        %1755 = vadd.xlane.f32.xlu0 %v1686
        %v1756 = vpop.xlane.xlu0 %1755
        %1757 = vadd.xlane.f32.xlu0 %v1691
        %v1758 = vpop.xlane.xlu0 %1757
        %1759 = vadd.xlane.f32.xlu0 %v1694
        %v1760 = vpop.xlane.xlu0 %1759
        %v1761 = vmul.f32 %v1698, %v924
        %v1762 = vmul.f32 %v1700, %v924
        %v1763 = vmul.f32 %v1702, %v924
        %v1764 = vmul.f32 %v1704, %v924
        %v1765 = vmul.f32 %v1706, %v924
        %v1766 = vmul.f32 %v1708, %v924
        %v1767 = vmul.f32 %v1710, %v924
        %v1768 = vmul.f32 %v1712, %v924
        %v1769 = vmul.f32 %v1714, %v924
        %v1770 = vmul.f32 %v1716, %v924
        %v1771 = vmul.f32 %v1718, %v924
        %v1772 = vmul.f32 %v1720, %v924
        %v1773 = vmul.f32 %v1722, %v924
        %v1774 = vmul.f32 %v1724, %v924
        %v1775 = vmul.f32 %v1726, %v924
        %v1776 = vmul.f32 %v1728, %v924
        %v1777 = vmul.f32 %v1730, %v924
        %v1778 = vmul.f32 %v1732, %v924
        %v1779 = vmul.f32 %v1734, %v924
        %v1780 = vmul.f32 %v1736, %v924
        %v1781 = vmul.f32 %v1738, %v924
        %v1782 = vmul.f32 %v1740, %v924
        %v1783 = vmul.f32 %v1742, %v924
        %v1784 = vmul.f32 %v1744, %v924
        %v1785 = vmul.f32 %v1746, %v924
        %v1786 = vmul.f32 %v1748, %v924
        %v1787 = vmul.f32 %v1750, %v924
        %v1788 = vmul.f32 %v1752, %v924
        %v1789 = vmul.f32 %v1754, %v924
        %v1790 = vmul.f32 %v1756, %v924
        %v1791 = vmul.f32 %v1758, %v924
        %v1792 = vmul.f32 %v1760, %v924
        %v1793 = vsub.f32 %v1538, %v1761
        %v1794 = vsub.f32 %v1541, %v1762
        %v1795 = vsub.f32 %v1546, %v1763
        %v1796 = vsub.f32 %v1549, %v1764
        %v1797 = vsub.f32 %v1554, %v1765
        %v1798 = vsub.f32 %v1557, %v1766
        %v1799 = vsub.f32 %v1562, %v1767
        %v1800 = vsub.f32 %v1565, %v1768
        %v1801 = vsub.f32 %v1570, %v1769
        %v1802 = vsub.f32 %v1573, %v1770
        %v1803 = vsub.f32 %v1578, %v1771
        %v1804 = vsub.f32 %v1581, %v1772
        %v1805 = vsub.f32 %v1586, %v1773
        %v1806 = vsub.f32 %v1589, %v1774
        %v1807 = vsub.f32 %v1594, %v1775
        %v1808 = vsub.f32 %v1597, %v1776
        %v1809 = vsub.f32 %v1635, %v1777
        %v1810 = vsub.f32 %v1638, %v1778
        %v1811 = vsub.f32 %v1643, %v1779
        %v1812 = vsub.f32 %v1646, %v1780
        %v1813 = vsub.f32 %v1651, %v1781
        %v1814 = vsub.f32 %v1654, %v1782
        %v1815 = vsub.f32 %v1659, %v1783
        %v1816 = vsub.f32 %v1662, %v1784
        %v1817 = vsub.f32 %v1667, %v1785
        %v1818 = vsub.f32 %v1670, %v1786
        %v1819 = vsub.f32 %v1675, %v1787
        %v1820 = vsub.f32 %v1678, %v1788
        %v1821 = vsub.f32 %v1683, %v1789
        %v1822 = vsub.f32 %v1686, %v1790
        %v1823 = vsub.f32 %v1691, %v1791
        %v1824 = vsub.f32 %v1694, %v1792
        %v1825 = vmul.f32 %v1793, %v1793
        %v1826 = vmul.f32 %v1794, %v1794
        %v1827 = vmul.f32 %v1795, %v1795
        %v1828 = vmul.f32 %v1796, %v1796
        %v1829 = vmul.f32 %v1797, %v1797
        %v1830 = vmul.f32 %v1798, %v1798
        %v1831 = vmul.f32 %v1799, %v1799
        %v1832 = vmul.f32 %v1800, %v1800
        %v1833 = vmul.f32 %v1801, %v1801
        %v1834 = vmul.f32 %v1802, %v1802
        %v1835 = vmul.f32 %v1803, %v1803
        %v1836 = vmul.f32 %v1804, %v1804
        %v1837 = vmul.f32 %v1805, %v1805
        %v1838 = vmul.f32 %v1806, %v1806
        %v1839 = vmul.f32 %v1807, %v1807
        %v1840 = vmul.f32 %v1808, %v1808
        %v1841 = vmul.f32 %v1809, %v1809
        %v1842 = vmul.f32 %v1810, %v1810
        %v1843 = vmul.f32 %v1811, %v1811
        %v1844 = vmul.f32 %v1812, %v1812
        %v1845 = vmul.f32 %v1813, %v1813
        %v1846 = vmul.f32 %v1814, %v1814
        %v1847 = vmul.f32 %v1815, %v1815
        %v1848 = vmul.f32 %v1816, %v1816
        %v1849 = vmul.f32 %v1817, %v1817
        %v1850 = vmul.f32 %v1818, %v1818
        %v1851 = vmul.f32 %v1819, %v1819
        %v1852 = vmul.f32 %v1820, %v1820
        %v1853 = vmul.f32 %v1821, %v1821
        %v1854 = vmul.f32 %v1822, %v1822
        %v1855 = vmul.f32 %v1823, %v1823
        %v1856 = vmul.f32 %v1824, %v1824
        %1857 = vadd.xlane.f32.xlu0 %v1825
        %v1858 = vpop.xlane.xlu0 %1857
        %1859 = vadd.xlane.f32.xlu0 %v1826
        %v1860 = vpop.xlane.xlu0 %1859
        %1861 = vadd.xlane.f32.xlu0 %v1827
        %v1862 = vpop.xlane.xlu0 %1861
        %1863 = vadd.xlane.f32.xlu0 %v1828
        %v1864 = vpop.xlane.xlu0 %1863
        %1865 = vadd.xlane.f32.xlu0 %v1829
        %v1866 = vpop.xlane.xlu0 %1865
        %1867 = vadd.xlane.f32.xlu0 %v1830
        %v1868 = vpop.xlane.xlu0 %1867
        %1869 = vadd.xlane.f32.xlu0 %v1831
        %v1870 = vpop.xlane.xlu0 %1869
        %1871 = vadd.xlane.f32.xlu0 %v1832
        %v1872 = vpop.xlane.xlu0 %1871
        %1873 = vadd.xlane.f32.xlu0 %v1833
        %v1874 = vpop.xlane.xlu0 %1873
        %1875 = vadd.xlane.f32.xlu0 %v1834
        %v1876 = vpop.xlane.xlu0 %1875
        %1877 = vadd.xlane.f32.xlu0 %v1835
        %v1878 = vpop.xlane.xlu0 %1877
        %1879 = vadd.xlane.f32.xlu0 %v1836
        %v1880 = vpop.xlane.xlu0 %1879
        %1881 = vadd.xlane.f32.xlu0 %v1837
        %v1882 = vpop.xlane.xlu0 %1881
        %1883 = vadd.xlane.f32.xlu0 %v1838
        %v1884 = vpop.xlane.xlu0 %1883
        %1885 = vadd.xlane.f32.xlu0 %v1839
        %v1886 = vpop.xlane.xlu0 %1885
        %1887 = vadd.xlane.f32.xlu0 %v1840
        %v1888 = vpop.xlane.xlu0 %1887
        %1889 = vadd.xlane.f32.xlu0 %v1841
        %v1890 = vpop.xlane.xlu0 %1889
        %1891 = vadd.xlane.f32.xlu0 %v1842
        %v1892 = vpop.xlane.xlu0 %1891
        %1893 = vadd.xlane.f32.xlu0 %v1843
        %v1894 = vpop.xlane.xlu0 %1893
        %1895 = vadd.xlane.f32.xlu0 %v1844
        %v1896 = vpop.xlane.xlu0 %1895
        %1897 = vadd.xlane.f32.xlu0 %v1845
        %v1898 = vpop.xlane.xlu0 %1897
        %1899 = vadd.xlane.f32.xlu0 %v1846
        %v1900 = vpop.xlane.xlu0 %1899
        %1901 = vadd.xlane.f32.xlu0 %v1847
        %v1902 = vpop.xlane.xlu0 %1901
        %1903 = vadd.xlane.f32.xlu0 %v1848
        %v1904 = vpop.xlane.xlu0 %1903
        %1905 = vadd.xlane.f32.xlu0 %v1849
        %v1906 = vpop.xlane.xlu0 %1905
        %1907 = vadd.xlane.f32.xlu0 %v1850
        %v1908 = vpop.xlane.xlu0 %1907
        %1909 = vadd.xlane.f32.xlu0 %v1851
        %v1910 = vpop.xlane.xlu0 %1909
        %1911 = vadd.xlane.f32.xlu0 %v1852
        %v1912 = vpop.xlane.xlu0 %1911
        %1913 = vadd.xlane.f32.xlu0 %v1853
        %v1914 = vpop.xlane.xlu0 %1913
        %1915 = vadd.xlane.f32.xlu0 %v1854
        %v1916 = vpop.xlane.xlu0 %1915
        %1917 = vadd.xlane.f32.xlu0 %v1855
        %v1918 = vpop.xlane.xlu0 %1917
        %1919 = vadd.xlane.f32.xlu0 %v1856
        %v1920 = vpop.xlane.xlu0 %1919
        %v1921 = vmul.f32 %v1858, %v924
        %v1922 = vmul.f32 %v1860, %v924
        %v1923 = vmul.f32 %v1862, %v924
        %v1924 = vmul.f32 %v1864, %v924
        %v1925 = vmul.f32 %v1866, %v924
        %v1926 = vmul.f32 %v1868, %v924
        %v1927 = vmul.f32 %v1870, %v924
        %v1928 = vmul.f32 %v1872, %v924
        %v1929 = vmul.f32 %v1874, %v924
        %v1930 = vmul.f32 %v1876, %v924
        %v1931 = vmul.f32 %v1878, %v924
        %v1932 = vmul.f32 %v1880, %v924
        %v1933 = vmul.f32 %v1882, %v924
        %v1934 = vmul.f32 %v1884, %v924
        %v1935 = vmul.f32 %v1886, %v924
        %v1936 = vmul.f32 %v1888, %v924
        %v1937 = vmul.f32 %v1890, %v924
        %v1938 = vmul.f32 %v1892, %v924
        %v1939 = vmul.f32 %v1894, %v924
        %v1940 = vmul.f32 %v1896, %v924
        %v1941 = vmul.f32 %v1898, %v924
        %v1942 = vmul.f32 %v1900, %v924
        %v1943 = vmul.f32 %v1902, %v924
        %v1944 = vmul.f32 %v1904, %v924
        %v1945 = vmul.f32 %v1906, %v924
        %v1946 = vmul.f32 %v1908, %v924
        %v1947 = vmul.f32 %v1910, %v924
        %v1948 = vmul.f32 %v1912, %v924
        %v1949 = vmul.f32 %v1914, %v924
        %v1950 = vmul.f32 %v1916, %v924
        %v1951 = vmul.f32 %v1918, %v924
        %v1952 = vmul.f32 %v1920, %v924
        %v1953 = vadd.f32 %v1921, 1e-05
        %v1954 = vadd.f32 %v1922, 1e-05
        %v1955 = vadd.f32 %v1923, 1e-05
        %v1956 = vadd.f32 %v1924, 1e-05
        %v1957 = vadd.f32 %v1925, 1e-05
        %v1958 = vadd.f32 %v1926, 1e-05
        %v1959 = vadd.f32 %v1927, 1e-05
        %v1960 = vadd.f32 %v1928, 1e-05
        %v1961 = vadd.f32 %v1929, 1e-05
        %v1962 = vadd.f32 %v1930, 1e-05
        %v1963 = vadd.f32 %v1931, 1e-05
        %v1964 = vadd.f32 %v1932, 1e-05
        %v1965 = vadd.f32 %v1933, 1e-05
        %v1966 = vadd.f32 %v1934, 1e-05
        %v1967 = vadd.f32 %v1935, 1e-05
        %v1968 = vadd.f32 %v1936, 1e-05
        %v1969 = vadd.f32 %v1937, 1e-05
        %v1970 = vadd.f32 %v1938, 1e-05
        %v1971 = vadd.f32 %v1939, 1e-05
        %v1972 = vadd.f32 %v1940, 1e-05
        %v1973 = vadd.f32 %v1941, 1e-05
        %v1974 = vadd.f32 %v1942, 1e-05
        %v1975 = vadd.f32 %v1943, 1e-05
        %v1976 = vadd.f32 %v1944, 1e-05
        %v1977 = vadd.f32 %v1945, 1e-05
        %v1978 = vadd.f32 %v1946, 1e-05
        %v1979 = vadd.f32 %v1947, 1e-05
        %v1980 = vadd.f32 %v1948, 1e-05
        %v1981 = vadd.f32 %v1949, 1e-05
        %v1982 = vadd.f32 %v1950, 1e-05
        %v1983 = vadd.f32 %v1951, 1e-05
        %v1984 = vadd.f32 %v1952, 1e-05
        %v1985 = vrsqrt.pop %v1953
        %v1986 = vrsqrt.pop %v1954
        %v1987 = vrsqrt.pop %v1955
        %v1988 = vrsqrt.pop %v1956
        %v1989 = vrsqrt.pop %v1957
        %v1990 = vrsqrt.pop %v1958
        %v1991 = vrsqrt.pop %v1959
        %v1992 = vrsqrt.pop %v1960
        %v1993 = vrsqrt.pop %v1961
        %v1994 = vrsqrt.pop %v1962
        %v1995 = vrsqrt.pop %v1963
        %v1996 = vrsqrt.pop %v1964
        %v1997 = vrsqrt.pop %v1965
        %v1998 = vrsqrt.pop %v1966
        %v1999 = vrsqrt.pop %v1967
        %v2000 = vrsqrt.pop %v1968
        %v2001 = vrsqrt.pop %v1969
        %v2002 = vrsqrt.pop %v1970
        %v2003 = vrsqrt.pop %v1971
        %v2004 = vrsqrt.pop %v1972
        %v2005 = vrsqrt.pop %v1973
        %v2006 = vrsqrt.pop %v1974
        %v2007 = vrsqrt.pop %v1975
        %v2008 = vrsqrt.pop %v1976
        %v2009 = vrsqrt.pop %v1977
        %v2010 = vrsqrt.pop %v1978
        %v2011 = vrsqrt.pop %v1979
        %v2012 = vrsqrt.pop %v1980
        %v2013 = vrsqrt.pop %v1981
        %v2014 = vrsqrt.pop %v1982
        %v2015 = vrsqrt.pop %v1983
        %v2016 = vrsqrt.pop %v1984
        %v2017 = vmul.f32 %v1793, %v1985
        %v2018 = vmul.f32 %v1794, %v1986
        %v2019 = vmul.f32 %v1795, %v1987
        %v2020 = vmul.f32 %v1796, %v1988
        %v2021 = vmul.f32 %v1797, %v1989
        %v2022 = vmul.f32 %v1798, %v1990
        %v2023 = vmul.f32 %v1799, %v1991
        %v2024 = vmul.f32 %v1800, %v1992
        %v2025 = vmul.f32 %v1801, %v1993
        %v2026 = vmul.f32 %v1802, %v1994
        %v2027 = vmul.f32 %v1803, %v1995
        %v2028 = vmul.f32 %v1804, %v1996
        %v2029 = vmul.f32 %v1805, %v1997
        %v2030 = vmul.f32 %v1806, %v1998
        %v2031 = vmul.f32 %v1807, %v1999
        %v2032 = vmul.f32 %v1808, %v2000
        %v2033 = vmul.f32 %v1809, %v2001
        %v2034 = vmul.f32 %v1810, %v2002
        %v2035 = vmul.f32 %v1811, %v2003
        %v2036 = vmul.f32 %v1812, %v2004
        %v2037 = vmul.f32 %v1813, %v2005
        %v2038 = vmul.f32 %v1814, %v2006
        %v2039 = vmul.f32 %v1815, %v2007
        %v2040 = vmul.f32 %v1816, %v2008
        %v2041 = vmul.f32 %v1817, %v2009
        %v2042 = vmul.f32 %v1818, %v2010
        %v2043 = vmul.f32 %v1819, %v2011
        %v2044 = vmul.f32 %v1820, %v2012
        %v2045 = vmul.f32 %v1821, %v2013
        %v2046 = vmul.f32 %v1822, %v2014
        %v2047 = vmul.f32 %v1823, %v2015
        %v2048 = vmul.f32 %v1824, %v2016
        %v2049 = vmax.f32 %v2017, 0.0
        %v2050 = vmax.f32 %v2018, 0.0
        %v2051 = vmax.f32 %v2019, 0.0
        %v2052 = vmax.f32 %v2020, 0.0
        %v2053 = vmax.f32 %v2021, 0.0
        %v2054 = vmax.f32 %v2022, 0.0
        %v2055 = vmax.f32 %v2023, 0.0
        %v2056 = vmax.f32 %v2024, 0.0
        %v2057 = vmax.f32 %v2025, 0.0
        %v2058 = vmax.f32 %v2026, 0.0
        %v2059 = vmax.f32 %v2027, 0.0
        %v2060 = vmax.f32 %v2028, 0.0
        %v2061 = vmax.f32 %v2029, 0.0
        %v2062 = vmax.f32 %v2030, 0.0
        %v2063 = vmax.f32 %v2031, 0.0
        %v2064 = vmax.f32 %v2032, 0.0
        %v2065 = vmax.f32 %v2033, 0.0
        %v2066 = vmax.f32 %v2034, 0.0
        %v2067 = vmax.f32 %v2035, 0.0
        %v2068 = vmax.f32 %v2036, 0.0
        %v2069 = vmax.f32 %v2037, 0.0
        %v2070 = vmax.f32 %v2038, 0.0
        %v2071 = vmax.f32 %v2039, 0.0
        %v2072 = vmax.f32 %v2040, 0.0
        %v2073 = vmax.f32 %v2041, 0.0
        %v2074 = vmax.f32 %v2042, 0.0
        %v2075 = vmax.f32 %v2043, 0.0
        %v2076 = vmax.f32 %v2044, 0.0
        %v2077 = vmax.f32 %v2045, 0.0
        %v2078 = vmax.f32 %v2046, 0.0
        %v2079 = vmax.f32 %v2047, 0.0
        %v2080 = vmax.f32 %v2048, 0.0
        %v2081 = vadd.f32 %v249, %v2049
        %v2082 = vadd.f32 %v250, %v2050
        %v2083 = vadd.f32 %v251, %v2051
        %v2084 = vadd.f32 %v252, %v2052
        %v2085 = vadd.f32 %v253, %v2053
        %v2086 = vadd.f32 %v254, %v2054
        %v2087 = vadd.f32 %v255, %v2055
        %v2088 = vadd.f32 %v256, %v2056
        %v2089 = vadd.f32 %v257, %v2057
        %v2090 = vadd.f32 %v258, %v2058
        %v2091 = vadd.f32 %v259, %v2059
        %v2092 = vadd.f32 %v260, %v2060
        %v2093 = vadd.f32 %v261, %v2061
        %v2094 = vadd.f32 %v262, %v2062
        %v2095 = vadd.f32 %v263, %v2063
        %v2096 = vadd.f32 %v264, %v2064
        %v2097 = vadd.f32 %v265, %v2065
        %v2098 = vadd.f32 %v266, %v2066
        %v2099 = vadd.f32 %v267, %v2067
        %v2100 = vadd.f32 %v268, %v2068
        %v2101 = vadd.f32 %v269, %v2069
        %v2102 = vadd.f32 %v270, %v2070
        %v2103 = vadd.f32 %v271, %v2071
        %v2104 = vadd.f32 %v272, %v2072
        %v2105 = vadd.f32 %v273, %v2073
        %v2106 = vadd.f32 %v274, %v2074
        %v2107 = vadd.f32 %v275, %v2075
        %v2108 = vadd.f32 %v276, %v2076
        %v2109 = vadd.f32 %v277, %v2077
        %v2110 = vadd.f32 %v278, %v2078
        %v2111 = vadd.f32 %v279, %v2079
        %v2112 = vadd.f32 %v280, %v2080
        %2113 = vadd.xlane.f32.xlu0 %v2081
        %v2114 = vpop.xlane.xlu0 %2113
        %2115 = vadd.xlane.f32.xlu0 %v2082
        %v2116 = vpop.xlane.xlu0 %2115
        %2117 = vadd.xlane.f32.xlu0 %v2083
        %v2118 = vpop.xlane.xlu0 %2117
        %2119 = vadd.xlane.f32.xlu0 %v2084
        %v2120 = vpop.xlane.xlu0 %2119
        %2121 = vadd.xlane.f32.xlu0 %v2085
        %v2122 = vpop.xlane.xlu0 %2121
        %2123 = vadd.xlane.f32.xlu0 %v2086
        %v2124 = vpop.xlane.xlu0 %2123
        %2125 = vadd.xlane.f32.xlu0 %v2087
        %v2126 = vpop.xlane.xlu0 %2125
        %2127 = vadd.xlane.f32.xlu0 %v2088
        %v2128 = vpop.xlane.xlu0 %2127
        %2129 = vadd.xlane.f32.xlu0 %v2089
        %v2130 = vpop.xlane.xlu0 %2129
        %2131 = vadd.xlane.f32.xlu0 %v2090
        %v2132 = vpop.xlane.xlu0 %2131
        %2133 = vadd.xlane.f32.xlu0 %v2091
        %v2134 = vpop.xlane.xlu0 %2133
        %2135 = vadd.xlane.f32.xlu0 %v2092
        %v2136 = vpop.xlane.xlu0 %2135
        %2137 = vadd.xlane.f32.xlu0 %v2093
        %v2138 = vpop.xlane.xlu0 %2137
        %2139 = vadd.xlane.f32.xlu0 %v2094
        %v2140 = vpop.xlane.xlu0 %2139
        %2141 = vadd.xlane.f32.xlu0 %v2095
        %v2142 = vpop.xlane.xlu0 %2141
        %2143 = vadd.xlane.f32.xlu0 %v2096
        %v2144 = vpop.xlane.xlu0 %2143
        %2145 = vadd.xlane.f32.xlu0 %v2097
        %v2146 = vpop.xlane.xlu0 %2145
        %2147 = vadd.xlane.f32.xlu0 %v2098
        %v2148 = vpop.xlane.xlu0 %2147
        %2149 = vadd.xlane.f32.xlu0 %v2099
        %v2150 = vpop.xlane.xlu0 %2149
        %2151 = vadd.xlane.f32.xlu0 %v2100
        %v2152 = vpop.xlane.xlu0 %2151
        %2153 = vadd.xlane.f32.xlu0 %v2101
        %v2154 = vpop.xlane.xlu0 %2153
        %2155 = vadd.xlane.f32.xlu0 %v2102
        %v2156 = vpop.xlane.xlu0 %2155
        %2157 = vadd.xlane.f32.xlu0 %v2103
        %v2158 = vpop.xlane.xlu0 %2157
        %2159 = vadd.xlane.f32.xlu0 %v2104
        %v2160 = vpop.xlane.xlu0 %2159
        %2161 = vadd.xlane.f32.xlu0 %v2105
        %v2162 = vpop.xlane.xlu0 %2161
        %2163 = vadd.xlane.f32.xlu0 %v2106
        %v2164 = vpop.xlane.xlu0 %2163
        %2165 = vadd.xlane.f32.xlu0 %v2107
        %v2166 = vpop.xlane.xlu0 %2165
        %2167 = vadd.xlane.f32.xlu0 %v2108
        %v2168 = vpop.xlane.xlu0 %2167
        %2169 = vadd.xlane.f32.xlu0 %v2109
        %v2170 = vpop.xlane.xlu0 %2169
        %2171 = vadd.xlane.f32.xlu0 %v2110
        %v2172 = vpop.xlane.xlu0 %2171
        %2173 = vadd.xlane.f32.xlu0 %v2111
        %v2174 = vpop.xlane.xlu0 %2173
        %2175 = vadd.xlane.f32.xlu0 %v2112
        %v2176 = vpop.xlane.xlu0 %2175
        %v2177 = vmul.f32 %v2114, %v924
        %v2178 = vmul.f32 %v2116, %v924
        %v2179 = vmul.f32 %v2118, %v924
        %v2180 = vmul.f32 %v2120, %v924
        %v2181 = vmul.f32 %v2122, %v924
        %v2182 = vmul.f32 %v2124, %v924
        %v2183 = vmul.f32 %v2126, %v924
        %v2184 = vmul.f32 %v2128, %v924
        %v2185 = vmul.f32 %v2130, %v924
        %v2186 = vmul.f32 %v2132, %v924
        %v2187 = vmul.f32 %v2134, %v924
        %v2188 = vmul.f32 %v2136, %v924
        %v2189 = vmul.f32 %v2138, %v924
        %v2190 = vmul.f32 %v2140, %v924
        %v2191 = vmul.f32 %v2142, %v924
        %v2192 = vmul.f32 %v2144, %v924
        %v2193 = vmul.f32 %v2146, %v924
        %v2194 = vmul.f32 %v2148, %v924
        %v2195 = vmul.f32 %v2150, %v924
        %v2196 = vmul.f32 %v2152, %v924
        %v2197 = vmul.f32 %v2154, %v924
        %v2198 = vmul.f32 %v2156, %v924
        %v2199 = vmul.f32 %v2158, %v924
        %v2200 = vmul.f32 %v2160, %v924
        %v2201 = vmul.f32 %v2162, %v924
        %v2202 = vmul.f32 %v2164, %v924
        %v2203 = vmul.f32 %v2166, %v924
        %v2204 = vmul.f32 %v2168, %v924
        %v2205 = vmul.f32 %v2170, %v924
        %v2206 = vmul.f32 %v2172, %v924
        %v2207 = vmul.f32 %v2174, %v924
        %v2208 = vmul.f32 %v2176, %v924
        %v2209 = vsub.f32 %v2081, %v2177
        %v2210 = vsub.f32 %v2082, %v2178
        %v2211 = vsub.f32 %v2083, %v2179
        %v2212 = vsub.f32 %v2084, %v2180
        %v2213 = vsub.f32 %v2085, %v2181
        %v2214 = vsub.f32 %v2086, %v2182
        %v2215 = vsub.f32 %v2087, %v2183
        %v2216 = vsub.f32 %v2088, %v2184
        %v2217 = vsub.f32 %v2089, %v2185
        %v2218 = vsub.f32 %v2090, %v2186
        %v2219 = vsub.f32 %v2091, %v2187
        %v2220 = vsub.f32 %v2092, %v2188
        %v2221 = vsub.f32 %v2093, %v2189
        %v2222 = vsub.f32 %v2094, %v2190
        %v2223 = vsub.f32 %v2095, %v2191
        %v2224 = vsub.f32 %v2096, %v2192
        %v2225 = vsub.f32 %v2097, %v2193
        %v2226 = vsub.f32 %v2098, %v2194
        %v2227 = vsub.f32 %v2099, %v2195
        %v2228 = vsub.f32 %v2100, %v2196
        %v2229 = vsub.f32 %v2101, %v2197
        %v2230 = vsub.f32 %v2102, %v2198
        %v2231 = vsub.f32 %v2103, %v2199
        %v2232 = vsub.f32 %v2104, %v2200
        %v2233 = vsub.f32 %v2105, %v2201
        %v2234 = vsub.f32 %v2106, %v2202
        %v2235 = vsub.f32 %v2107, %v2203
        %v2236 = vsub.f32 %v2108, %v2204
        %v2237 = vsub.f32 %v2109, %v2205
        %v2238 = vsub.f32 %v2110, %v2206
        %v2239 = vsub.f32 %v2111, %v2207
        %v2240 = vsub.f32 %v2112, %v2208
        %v2241 = vmul.f32 %v2209, %v2209
        %v2242 = vmul.f32 %v2210, %v2210
        %v2243 = vmul.f32 %v2211, %v2211
        %v2244 = vmul.f32 %v2212, %v2212
        %v2245 = vmul.f32 %v2213, %v2213
        %v2246 = vmul.f32 %v2214, %v2214
        %v2247 = vmul.f32 %v2215, %v2215
        %v2248 = vmul.f32 %v2216, %v2216
        %v2249 = vmul.f32 %v2217, %v2217
        %v2250 = vmul.f32 %v2218, %v2218
        %v2251 = vmul.f32 %v2219, %v2219
        %v2252 = vmul.f32 %v2220, %v2220
        %v2253 = vmul.f32 %v2221, %v2221
        %v2254 = vmul.f32 %v2222, %v2222
        %v2255 = vmul.f32 %v2223, %v2223
        %v2256 = vmul.f32 %v2224, %v2224
        %v2257 = vmul.f32 %v2225, %v2225
        %v2258 = vmul.f32 %v2226, %v2226
        %v2259 = vmul.f32 %v2227, %v2227
        %v2260 = vmul.f32 %v2228, %v2228
        %v2261 = vmul.f32 %v2229, %v2229
        %v2262 = vmul.f32 %v2230, %v2230
        %v2263 = vmul.f32 %v2231, %v2231
        %v2264 = vmul.f32 %v2232, %v2232
        %v2265 = vmul.f32 %v2233, %v2233
        %v2266 = vmul.f32 %v2234, %v2234
        %v2267 = vmul.f32 %v2235, %v2235
        %v2268 = vmul.f32 %v2236, %v2236
        %v2269 = vmul.f32 %v2237, %v2237
        %v2270 = vmul.f32 %v2238, %v2238
        %v2271 = vmul.f32 %v2239, %v2239
        %v2272 = vmul.f32 %v2240, %v2240
        %2273 = vadd.xlane.f32.xlu0 %v2241
        %v2274 = vpop.xlane.xlu0 %2273
        %2275 = vadd.xlane.f32.xlu0 %v2242
        %v2276 = vpop.xlane.xlu0 %2275
        %2277 = vadd.xlane.f32.xlu0 %v2243
        %v2278 = vpop.xlane.xlu0 %2277
        %2279 = vadd.xlane.f32.xlu0 %v2244
        %v2280 = vpop.xlane.xlu0 %2279
        %2281 = vadd.xlane.f32.xlu0 %v2245
        %v2282 = vpop.xlane.xlu0 %2281
        %2283 = vadd.xlane.f32.xlu0 %v2246
        %v2284 = vpop.xlane.xlu0 %2283
        %2285 = vadd.xlane.f32.xlu0 %v2247
        %v2286 = vpop.xlane.xlu0 %2285
        %2287 = vadd.xlane.f32.xlu0 %v2248
        %v2288 = vpop.xlane.xlu0 %2287
        %2289 = vadd.xlane.f32.xlu0 %v2249
        %v2290 = vpop.xlane.xlu0 %2289
        %2291 = vadd.xlane.f32.xlu0 %v2250
        %v2292 = vpop.xlane.xlu0 %2291
        %2293 = vadd.xlane.f32.xlu0 %v2251
        %v2294 = vpop.xlane.xlu0 %2293
        %2295 = vadd.xlane.f32.xlu0 %v2252
        %v2296 = vpop.xlane.xlu0 %2295
        %2297 = vadd.xlane.f32.xlu0 %v2253
        %v2298 = vpop.xlane.xlu0 %2297
        %2299 = vadd.xlane.f32.xlu0 %v2254
        %v2300 = vpop.xlane.xlu0 %2299
        %2301 = vadd.xlane.f32.xlu0 %v2255
        %v2302 = vpop.xlane.xlu0 %2301
        %2303 = vadd.xlane.f32.xlu0 %v2256
        %v2304 = vpop.xlane.xlu0 %2303
        %2305 = vadd.xlane.f32.xlu0 %v2257
        %v2306 = vpop.xlane.xlu0 %2305
        %2307 = vadd.xlane.f32.xlu0 %v2258
        %v2308 = vpop.xlane.xlu0 %2307
        %2309 = vadd.xlane.f32.xlu0 %v2259
        %v2310 = vpop.xlane.xlu0 %2309
        %2311 = vadd.xlane.f32.xlu0 %v2260
        %v2312 = vpop.xlane.xlu0 %2311
        %2313 = vadd.xlane.f32.xlu0 %v2261
        %v2314 = vpop.xlane.xlu0 %2313
        %2315 = vadd.xlane.f32.xlu0 %v2262
        %v2316 = vpop.xlane.xlu0 %2315
        %2317 = vadd.xlane.f32.xlu0 %v2263
        %v2318 = vpop.xlane.xlu0 %2317
        %2319 = vadd.xlane.f32.xlu0 %v2264
        %v2320 = vpop.xlane.xlu0 %2319
        %2321 = vadd.xlane.f32.xlu0 %v2265
        %v2322 = vpop.xlane.xlu0 %2321
        %2323 = vadd.xlane.f32.xlu0 %v2266
        %v2324 = vpop.xlane.xlu0 %2323
        %2325 = vadd.xlane.f32.xlu0 %v2267
        %v2326 = vpop.xlane.xlu0 %2325
        %2327 = vadd.xlane.f32.xlu0 %v2268
        %v2328 = vpop.xlane.xlu0 %2327
        %2329 = vadd.xlane.f32.xlu0 %v2269
        %v2330 = vpop.xlane.xlu0 %2329
        %2331 = vadd.xlane.f32.xlu0 %v2270
        %v2332 = vpop.xlane.xlu0 %2331
        %2333 = vadd.xlane.f32.xlu0 %v2271
        %v2334 = vpop.xlane.xlu0 %2333
        %2335 = vadd.xlane.f32.xlu0 %v2272
        %v2336 = vpop.xlane.xlu0 %2335
        %v2337 = vmul.f32 %v2274, %v924
        %v2338 = vmul.f32 %v2276, %v924
        %v2339 = vmul.f32 %v2278, %v924
        %v2340 = vmul.f32 %v2280, %v924
        %v2341 = vmul.f32 %v2282, %v924
        %v2342 = vmul.f32 %v2284, %v924
        %v2343 = vmul.f32 %v2286, %v924
        %v2344 = vmul.f32 %v2288, %v924
        %v2345 = vmul.f32 %v2290, %v924
        %v2346 = vmul.f32 %v2292, %v924
        %v2347 = vmul.f32 %v2294, %v924
        %v2348 = vmul.f32 %v2296, %v924
        %v2349 = vmul.f32 %v2298, %v924
        %v2350 = vmul.f32 %v2300, %v924
        %v2351 = vmul.f32 %v2302, %v924
        %v2352 = vmul.f32 %v2304, %v924
        %v2353 = vmul.f32 %v2306, %v924
        %v2354 = vmul.f32 %v2308, %v924
        %v2355 = vmul.f32 %v2310, %v924
        %v2356 = vmul.f32 %v2312, %v924
        %v2357 = vmul.f32 %v2314, %v924
        %v2358 = vmul.f32 %v2316, %v924
        %v2359 = vmul.f32 %v2318, %v924
        %v2360 = vmul.f32 %v2320, %v924
        %v2361 = vmul.f32 %v2322, %v924
        %v2362 = vmul.f32 %v2324, %v924
        %v2363 = vmul.f32 %v2326, %v924
        %v2364 = vmul.f32 %v2328, %v924
        %v2365 = vmul.f32 %v2330, %v924
        %v2366 = vmul.f32 %v2332, %v924
        %v2367 = vmul.f32 %v2334, %v924
        %v2368 = vmul.f32 %v2336, %v924
        %v2369 = vadd.f32 %v2337, 1e-05
        %v2370 = vadd.f32 %v2338, 1e-05
        %v2371 = vadd.f32 %v2339, 1e-05
        %v2372 = vadd.f32 %v2340, 1e-05
        %v2373 = vadd.f32 %v2341, 1e-05
        %v2374 = vadd.f32 %v2342, 1e-05
        %v2375 = vadd.f32 %v2343, 1e-05
        %v2376 = vadd.f32 %v2344, 1e-05
        %v2377 = vadd.f32 %v2345, 1e-05
        %v2378 = vadd.f32 %v2346, 1e-05
        %v2379 = vadd.f32 %v2347, 1e-05
        %v2380 = vadd.f32 %v2348, 1e-05
        %v2381 = vadd.f32 %v2349, 1e-05
        %v2382 = vadd.f32 %v2350, 1e-05
        %v2383 = vadd.f32 %v2351, 1e-05
        %v2384 = vadd.f32 %v2352, 1e-05
        %v2385 = vadd.f32 %v2353, 1e-05
        %v2386 = vadd.f32 %v2354, 1e-05
        %v2387 = vadd.f32 %v2355, 1e-05
        %v2388 = vadd.f32 %v2356, 1e-05
        %v2389 = vadd.f32 %v2357, 1e-05
        %v2390 = vadd.f32 %v2358, 1e-05
        %v2391 = vadd.f32 %v2359, 1e-05
        %v2392 = vadd.f32 %v2360, 1e-05
        %v2393 = vadd.f32 %v2361, 1e-05
        %v2394 = vadd.f32 %v2362, 1e-05
        %v2395 = vadd.f32 %v2363, 1e-05
        %v2396 = vadd.f32 %v2364, 1e-05
        %v2397 = vadd.f32 %v2365, 1e-05
        %v2398 = vadd.f32 %v2366, 1e-05
        %v2399 = vadd.f32 %v2367, 1e-05
        %v2400 = vadd.f32 %v2368, 1e-05
        %v2401 = vrsqrt.pop %v2369
        %v2402 = vrsqrt.pop %v2370
        %v2403 = vrsqrt.pop %v2371
        %v2404 = vrsqrt.pop %v2372
        %v2405 = vrsqrt.pop %v2373
        %v2406 = vrsqrt.pop %v2374
        %v2407 = vrsqrt.pop %v2375
        %v2408 = vrsqrt.pop %v2376
        %v2409 = vrsqrt.pop %v2377
        %v2410 = vrsqrt.pop %v2378
        %v2411 = vrsqrt.pop %v2379
        %v2412 = vrsqrt.pop %v2380
        %v2413 = vrsqrt.pop %v2381
        %v2414 = vrsqrt.pop %v2382
        %v2415 = vrsqrt.pop %v2383
        %v2416 = vrsqrt.pop %v2384
        %v2417 = vrsqrt.pop %v2385
        %v2418 = vrsqrt.pop %v2386
        %v2419 = vrsqrt.pop %v2387
        %v2420 = vrsqrt.pop %v2388
        %v2421 = vrsqrt.pop %v2389
        %v2422 = vrsqrt.pop %v2390
        %v2423 = vrsqrt.pop %v2391
        %v2424 = vrsqrt.pop %v2392
        %v2425 = vrsqrt.pop %v2393
        %v2426 = vrsqrt.pop %v2394
        %v2427 = vrsqrt.pop %v2395
        %v2428 = vrsqrt.pop %v2396
        %v2429 = vrsqrt.pop %v2397
        %v2430 = vrsqrt.pop %v2398
        %v2431 = vrsqrt.pop %v2399
        %v2432 = vrsqrt.pop %v2400
        %v2433 = vmul.f32 %v2209, %v2401
        %v2434 = vmul.f32 %v2210, %v2402
        %v2435 = vmul.f32 %v2211, %v2403
        %v2436 = vmul.f32 %v2212, %v2404
        %v2437 = vmul.f32 %v2213, %v2405
        %v2438 = vmul.f32 %v2214, %v2406
        %v2439 = vmul.f32 %v2215, %v2407
        %v2440 = vmul.f32 %v2216, %v2408
        %v2441 = vmul.f32 %v2217, %v2409
        %v2442 = vmul.f32 %v2218, %v2410
        %v2443 = vmul.f32 %v2219, %v2411
        %v2444 = vmul.f32 %v2220, %v2412
        %v2445 = vmul.f32 %v2221, %v2413
        %v2446 = vmul.f32 %v2222, %v2414
        %v2447 = vmul.f32 %v2223, %v2415
        %v2448 = vmul.f32 %v2224, %v2416
        %v2449 = vmul.f32 %v2225, %v2417
        %v2450 = vmul.f32 %v2226, %v2418
        %v2451 = vmul.f32 %v2227, %v2419
        %v2452 = vmul.f32 %v2228, %v2420
        %v2453 = vmul.f32 %v2229, %v2421
        %v2454 = vmul.f32 %v2230, %v2422
        %v2455 = vmul.f32 %v2231, %v2423
        %v2456 = vmul.f32 %v2232, %v2424
        %v2457 = vmul.f32 %v2233, %v2425
        %v2458 = vmul.f32 %v2234, %v2426
        %v2459 = vmul.f32 %v2235, %v2427
        %v2460 = vmul.f32 %v2236, %v2428
        %v2461 = vmul.f32 %v2237, %v2429
        %v2462 = vmul.f32 %v2238, %v2430
        %v2463 = vmul.f32 %v2239, %v2431
        %v2464 = vmul.f32 %v2240, %v2432
        %2465 = vst [vmem:[%s244] sm:$0xff] %v2433
        %2466 = vst [vmem:[%s244 + $0x8] sm:$0xff] %v2434
        %2467 = vst [vmem:[%s244 + $0x10] sm:$0xff] %v2435
        %2468 = vst [vmem:[%s244 + $0x18] sm:$0xff] %v2436
        %2469 = vst [vmem:[%s244 + $0x20] sm:$0xff] %v2437
        %2470 = vst [vmem:[%s244 + $0x28] sm:$0xff] %v2438
        %2471 = vst [vmem:[%s244 + $0x30] sm:$0xff] %v2439
        %2472 = vst [vmem:[%s244 + $0x38] sm:$0xff] %v2440
        %2473 = vst [vmem:[%s244 + $0x40] sm:$0xff] %v2441
        %2474 = vst [vmem:[%s244 + $0x48] sm:$0xff] %v2442
        %2475 = vst [vmem:[%s244 + $0x50] sm:$0xff] %v2443
        %2476 = vst [vmem:[%s244 + $0x58] sm:$0xff] %v2444
        %2477 = vst [vmem:[%s244 + $0x60] sm:$0xff] %v2445
        %2478 = vst [vmem:[%s244 + $0x68] sm:$0xff] %v2446
        %2479 = vst [vmem:[%s244 + $0x70] sm:$0xff] %v2447
        %2480 = vst [vmem:[%s244 + $0x78] sm:$0xff] %v2448
        %2481 = vst [vmem:[%s244 + $0x80] sm:$0xff] %v2449
        %2482 = vst [vmem:[%s244 + $0x88] sm:$0xff] %v2450
        %2483 = vst [vmem:[%s244 + $0x90] sm:$0xff] %v2451
        %2484 = vst [vmem:[%s244 + $0x98] sm:$0xff] %v2452
        %2485 = vst [vmem:[%s244 + $0xa0] sm:$0xff] %v2453
        %2486 = vst [vmem:[%s244 + $0xa8] sm:$0xff] %v2454
        %2487 = vst [vmem:[%s244 + $0xb0] sm:$0xff] %v2455
        %2488 = vst [vmem:[%s244 + $0xb8] sm:$0xff] %v2456
        %2489 = vst [vmem:[%s244 + $0xc0] sm:$0xff] %v2457
        %2490 = vst [vmem:[%s244 + $0xc8] sm:$0xff] %v2458
        %2491 = vst [vmem:[%s244 + $0xd0] sm:$0xff] %v2459
        %2492 = vst [vmem:[%s244 + $0xd8] sm:$0xff] %v2460
        %2493 = vst [vmem:[%s244 + $0xe0] sm:$0xff] %v2461
        %2494 = vst [vmem:[%s244 + $0xe8] sm:$0xff] %v2462
        %2495 = vst [vmem:[%s244 + $0xf0] sm:$0xff] %v2463
        %2496 = vst [vmem:[%s244 + $0xf8] sm:$0xff] %v2464
        %s2497 = sand.u32 %s104, 1
        %s2498 = scalar_lea.sflag [#allocation4], %s2497
        %s2499 = sand.u32 %s104, 1
        %s2500 = smul.addr %s2499, 256
        %s2501 = scalar_lea.vmem [#allocation8], %s2500
        // Predicated region
        $region45: #{tpu_custom_call.1} parent=31 // pred_check
          %p2502 = pneg %p114
        $region46: #{tpu_custom_call.1} parent=31 // pred_check_branch
          %2504 = sbr.rel (%p2502) target = $region48
        $region47: #{tpu_custom_call.1} parent=31 // pred_region
          %s2505 = smul.u32 2, %s23
          %s2507 = ssub.s32 4096, 4096
          %2508 = vsyncadd %s2498, %s2507
          %s2509 = smul.addr %s2505, 16
          %s2510 = smul.addr %s2509, 128
          %s2511 = scalar_lea.hbm %s3, %s2510
          %s2512 = sshll.u32 %s2501, 4
          %s2513 = int_to_ptr.vmem [resolvable:$true] %s2512
          %2518 = dma.vmem_to_hbm [thread:$0]  %s2513, 4096, %s2511, %s2498, 128, 128, 8
        $region48: #{tpu_custom_call.1} parent=31 // pred_fallthru
          _
      $region32: #{tpu_custom_call.1} parent=5 // pred_fallthru
        _
      %p2519 = scmp.le.s32.totalorder 2, %s18
      // Predicated region
      $region49: #{tpu_custom_call.1} parent=5 // pred_check
        %p2520 = pneg %p2519
      $region50: #{tpu_custom_call.1} parent=5 // pred_check_branch
        %2522 = sbr.rel (%p2520) target = $region52
      $region51: #{tpu_custom_call.1} parent=5 // pred_region
        %s2523 = ssub.s32 %s18, 2
        // Predicated region
        $region53: #{tpu_custom_call.1} parent=51 // pred_check
          %p2524 = pneg %p120
        $region54: #{tpu_custom_call.1} parent=51 // pred_check_branch
          %2526 = sbr.rel (%p2524) target = $region56
        $region55: #{tpu_custom_call.1} parent=51 // pred_region
          %s2527 = sand.u32 %s105, 1
          %s2528 = scalar_lea.sflag [#allocation4], %s2527
          %s2529 = sand.u32 %s105, 1
          %s2530 = smul.addr %s2529, 256
          %s2531 = scalar_lea.vmem [#allocation8], %s2530
          %2532 = dma.done %s2528, 4096
        $region56: #{tpu_custom_call.1} parent=51 // pred_fallthru
          _
      $region52: #{tpu_custom_call.1} parent=5 // pred_fallthru
        _
    $region6: #{tpu_custom_call.1} parent=1 // loop_footer
      %s22 = sadd.s32 1, %s18
    $region7: #{tpu_custom_call.1} parent=1 // loop_footer_branch
      %17 = sbr.rel target = $region3
    $region8: #{tpu_custom_call.1} parent=1 // loop_exit
      _
    %2533 = vsyncpa [#allocation3], 1
    %s2534 = scalar_lea.sflag [#allocation3], 1
    %2535 = vsyncpa %s2534, 1
    %2536 = vsyncpa [#allocation6], 1
    %s2537 = scalar_lea.sflag [#allocation6], 1
    %2538 = vsyncpa %s2537, 1
    %2539 = vsyncpa [#allocation4], 1
    %s2540 = scalar_lea.sflag [#allocation4], 1
    %2541 = vsyncpa %s2540, 1

</llo_original>
